<compile_context>
chip_gen: v7x
topology: tpu7x:2x2x1
jax: 0.10.0
libtpu: 0.0.40
codegen_flags: <defaults>
</compile_context>

<pallas_src>
import jax
import jax.numpy as jnp
import numpy as np
from jax.experimental import pallas as pl
from jax.experimental.pallas import tpu as pltpu

C = 64        # channels, fixed by the module (Conv1d(64, 64, ...))
TPAD = 6      # total one-sided halo on the padded input = 3 + 2 + 1


def block_kernel(x_ref, w1_ref, b1_ref, w2_ref, b2_ref, w3_ref, b3_ref,
                 w4_ref, b4_ref, out_ref):
    L = out_ref.shape[2]
    x0 = x_ref[0]                         # (C, L + 2*TPAD) bf16, zero halo

    def fused_conv(inp, w_ref, b_ref, ksize, out_w):
        # One matmul per conv: tap k's operand column j is inp[:, j + k].
        stk = jnp.concatenate([inp[:, k:k + out_w] for k in range(ksize)],
                              axis=0)                        # (ksize*C, out_w)
        y = jnp.dot(w_ref[...], stk.astype(jnp.bfloat16),
                    preferred_element_type=jnp.float32)      # (C, out_w) f32
        return y + b_ref[...]                                # bias broadcast

    def valid_mask(width, halo):
        # True on columns that correspond to real (unpadded) time positions.
        col = jax.lax.broadcasted_iota(jnp.int32, (C, width), 1)
        return (col >= halo) & (col < halo + L)

    # conv1 (k=7, p=3): evaluate on positions [-3, L+3)  -> width L+6,
    # then mask the halo to zero (this IS the zero padding seen by conv2).
    y1 = fused_conv(x0, w1_ref, b1_ref, 7, L + 6)
    h1 = jnp.where(valid_mask(L + 6, 3), jnp.maximum(y1, 0.0), 0.0)

    # conv2 (k=5, p=2): evaluate on positions [-1, L+1) -> width L+2.
    y2 = fused_conv(h1, w2_ref, b2_ref, 5, L + 2)
    h2 = jnp.where(valid_mask(L + 2, 1), jnp.maximum(y2, 0.0), 0.0)

    # conv3 (k=3, p=1): only the L valid output positions.
    y3 = jnp.maximum(fused_conv(h2, w3_ref, b3_ref, 3, L), 0.0)

    # shortcut conv4 (k=1) on the unpadded centre of x.
    xc = x0[:, TPAD:TPAD + L]
    y4 = jnp.dot(w4_ref[...], xc.astype(jnp.bfloat16),
                 preferred_element_type=jnp.float32) + b4_ref[...]

    out_ref[0] = jnp.maximum(y3 + y4, 0.0).astype(out_ref.dtype)


def block_forward(x_ncl, params):
    """x_ncl: (N, 64, L) float32 in PyTorch NCL layout. Returns (N, 64, L)."""
    (w1, b1), (w2, b2), (w3, b3), (w4, b4) = params
    N, Cin, L = x_ncl.shape
    assert Cin == C

    # Only wrapper-side data op: fused bf16 cast + zero-pad of the time axis.
    # No layout transposes -- the kernel works in NCL directly.
    x_pad = jnp.pad(x_ncl.astype(jnp.bfloat16),
                    ((0, 0), (0, 0), (TPAD, TPAD)))
    Lp = L + 2 * TPAD

    def flat_w(w):
        # PyTorch (C_out, C_in, K) -> (C_out, K*C_in) bf16, tap-major columns
        # matching the im2col row order used in the kernel.
        k = w.shape[2]
        return jnp.transpose(w, (0, 2, 1)).reshape(C, k * C).astype(jnp.bfloat16)

    w1f, w2f, w3f = flat_w(w1), flat_w(w2), flat_w(w3)
    w4f = w4[:, :, 0].astype(jnp.bfloat16)                   # (C, C)
    b1c, b2c, b3c, b4c = (b.reshape(C, 1).astype(jnp.float32)
                          for b in (b1, b2, b3, b4))

    def full_spec(arr):
        zeros = (0,) * arr.ndim
        return pl.BlockSpec(arr.shape, lambda b: zeros)

    return pl.pallas_call(
        block_kernel,
        out_shape=jax.ShapeDtypeStruct((N, C, L), jnp.float32),
        grid_spec=pltpu.PrefetchScalarGridSpec(
            num_scalar_prefetch=0,
            grid=(N,),
            in_specs=[
                pl.BlockSpec((1, C, Lp), lambda b: (b, 0, 0)),   # x (padded)
                full_spec(w1f), full_spec(b1c),                  # conv1
                full_spec(w2f), full_spec(b2c),                  # conv2
                full_spec(w3f), full_spec(b3c),                  # conv3
                full_spec(w4f), full_spec(b4c),                  # conv4
            ],
            out_specs=pl.BlockSpec((1, C, L), lambda b: (b, 0, 0)),
        ),
        compiler_params=pltpu.CompilerParams(
            dimension_semantics=("parallel",)),
    )(x_pad, w1f, b1c, w2f, b2c, w3f, b3c, w4f, b4c)


# ---------------- plain-JAX reference (for verification) ----------------
def _conv1d_ref(x, w, b, pad):
    y = jax.lax.conv_general_dilated(
        x, w, window_strides=(1,), padding=[(pad, pad)],
        dimension_numbers=("NCH", "OIH", "NCH"))
    return y + b[None, :, None]


def block_ref(x, params):
    (w1, b1), (w2, b2), (w3, b3), (w4, b4) = params
    res = _conv1d_ref(x, w4, b4, 0)
    h = jax.nn.relu(_conv1d_ref(x, w1, b1, 3))
    h = jax.nn.relu(_conv1d_ref(h, w2, b2, 2))
    h = jax.nn.relu(_conv1d_ref(h, w3, b3, 1))
    return jax.nn.relu(h + res)


if __name__ == "__main__":
    key = jax.random.PRNGKey(0)
    N, L = 2, 16

    keys = jax.random.split(key, 9)
    x = jax.random.normal(keys[0], (N, C, L), jnp.float32)

    def init_conv(kw, kb, ksize):
        fan_in = C * ksize
        bound = 1.0 / np.sqrt(fan_in)
        w = jax.random.uniform(kw, (C, C, ksize), jnp.float32, -bound, bound)
        b = jax.random.uniform(kb, (C,), jnp.float32, -bound, bound)
        return w, b

    params = (
        init_conv(keys[1], keys[2], 7),
        init_conv(keys[3], keys[4], 5),
        init_conv(keys[5], keys[6], 3),
        init_conv(keys[7], keys[8], 1),
    )

    out = jax.block_until_ready(block_forward(x, params))
    ref = jax.block_until_ready(block_ref(x, params))

    assert out.shape == (N, C, L), out.shape
    # bf16 matmul operands with f32 accumulation -> relaxed tolerance.
    np.testing.assert_allclose(np.asarray(out), np.asarray(ref),
                               rtol=5e-2, atol=5e-2)
    print("KERNEL_OK")
</pallas_src>

<mosaic_0001>
module attributes {stable_mosaic.version = 11 : i64} {
  func.func @block_kernel(%arg0: i32, %arg1: memref<1x64x28xbf16, #tpu.memory_space<vmem>>, %arg2: memref<64x448xbf16, #tpu.memory_space<vmem>>, %arg3: memref<64x1xf32, #tpu.memory_space<vmem>>, %arg4: memref<64x320xbf16, #tpu.memory_space<vmem>>, %arg5: memref<64x1xf32, #tpu.memory_space<vmem>>, %arg6: memref<64x192xbf16, #tpu.memory_space<vmem>>, %arg7: memref<64x1xf32, #tpu.memory_space<vmem>>, %arg8: memref<64x64xbf16, #tpu.memory_space<vmem>>, %arg9: memref<64x1xf32, #tpu.memory_space<vmem>>, %arg10: memref<1x64x16xf32, #tpu.memory_space<vmem>>) attributes {dimension_semantics = [#tpu.dimension_semantics<parallel>], iteration_bounds = array<i64: 2>, scalar_prefetch = 0 : i64, scratch_operands = 0 : i64, tpu.core_type = #tpu.core_type<tc>, window_params = [{transform_indices = @transform_0, window_bounds = array<i64: 1, 64, 28>}, {pipeline_mode = #tpu.pipeline_mode<synchronous>, transform_indices = @transform_1, window_bounds = array<i64: 64, 448>}, {pipeline_mode = #tpu.pipeline_mode<synchronous>, transform_indices = @transform_2, window_bounds = array<i64: 64, 1>}, {pipeline_mode = #tpu.pipeline_mode<synchronous>, transform_indices = @transform_3, window_bounds = array<i64: 64, 320>}, {pipeline_mode = #tpu.pipeline_mode<synchronous>, transform_indices = @transform_4, window_bounds = array<i64: 64, 1>}, {pipeline_mode = #tpu.pipeline_mode<synchronous>, transform_indices = @transform_5, window_bounds = array<i64: 64, 192>}, {pipeline_mode = #tpu.pipeline_mode<synchronous>, transform_indices = @transform_6, window_bounds = array<i64: 64, 1>}, {pipeline_mode = #tpu.pipeline_mode<synchronous>, transform_indices = @transform_7, window_bounds = array<i64: 64, 64>}, {pipeline_mode = #tpu.pipeline_mode<synchronous>, transform_indices = @transform_8, window_bounds = array<i64: 64, 1>}, {transform_indices = @transform_9, window_bounds = array<i64: 1, 64, 16>}]} {
    %c0 = arith.constant 0 : index
    %c0_0 = arith.constant 0 : index
    %c0_1 = arith.constant 0 : index
    %0 = vector.load %arg1[%c0, %c0_0, %c0_1] : memref<1x64x28xbf16, #tpu.memory_space<vmem>>, vector<1x64x28xbf16>
    %1 = vector.shape_cast %0 : vector<1x64x28xbf16> to vector<64x28xbf16>
    %2 = vector.extract_strided_slice %1 {offsets = [0, 0], sizes = [64, 22], strides = [1, 1]} : vector<64x28xbf16> to vector<64x22xbf16>
    %3 = vector.extract_strided_slice %1 {offsets = [0, 1], sizes = [64, 22], strides = [1, 1]} : vector<64x28xbf16> to vector<64x22xbf16>
    %4 = vector.extract_strided_slice %1 {offsets = [0, 2], sizes = [64, 22], strides = [1, 1]} : vector<64x28xbf16> to vector<64x22xbf16>
    %5 = vector.extract_strided_slice %1 {offsets = [0, 3], sizes = [64, 22], strides = [1, 1]} : vector<64x28xbf16> to vector<64x22xbf16>
    %6 = vector.extract_strided_slice %1 {offsets = [0, 4], sizes = [64, 22], strides = [1, 1]} : vector<64x28xbf16> to vector<64x22xbf16>
    %7 = vector.extract_strided_slice %1 {offsets = [0, 5], sizes = [64, 22], strides = [1, 1]} : vector<64x28xbf16> to vector<64x22xbf16>
    %8 = vector.extract_strided_slice %1 {offsets = [0, 6], sizes = [64, 22], strides = [1, 1]} : vector<64x28xbf16> to vector<64x22xbf16>
    %9 = tpu.concatenate %2, %3, %4, %5, %6, %7, %8 in 0 : vector<64x22xbf16>, vector<64x22xbf16>, vector<64x22xbf16>, vector<64x22xbf16>, vector<64x22xbf16>, vector<64x22xbf16>, vector<64x22xbf16> -> vector<448x22xbf16>
    %c0_2 = arith.constant 0 : index
    %c0_3 = arith.constant 0 : index
    %10 = vector.load %arg2[%c0_2, %c0_3] : memref<64x448xbf16, #tpu.memory_space<vmem>>, vector<64x448xbf16>
    %cst = arith.constant dense<0.000000e+00> : vector<64x22xf32>
    %11 = tpu.matmul %10, %9, %cst {dimension_numbers = #tpu.dot_dimension_numbers<[1], [0], [0], [1], [0, 0, 1, 1], [], []>} : vector<64x448xbf16>, vector<448x22xbf16>, vector<64x22xf32> -> vector<64x22xf32>
    %c0_4 = arith.constant 0 : index
    %c0_5 = arith.constant 0 : index
    %12 = vector.load %arg3[%c0_4, %c0_5] : memref<64x1xf32, #tpu.memory_space<vmem>>, vector<64x1xf32>
    %13 = vector.broadcast %12 : vector<64x1xf32> to vector<64x22xf32>
    %14 = arith.addf %11, %13 : vector<64x22xf32>
    %15 = tpu.iota {dimensions = array<i32: 1>} : vector<64x22xi32>
    %c3_i32 = arith.constant 3 : i32
    %16 = vector.broadcast %c3_i32 : i32 to vector<64x22xi32>
    %17 = arith.cmpi sge, %15, %16 : vector<64x22xi32>
    %c19_i32 = arith.constant 19 : i32
    %18 = vector.broadcast %c19_i32 : i32 to vector<64x22xi32>
    %19 = arith.cmpi slt, %15, %18 : vector<64x22xi32>
    %20 = arith.andi %17, %19 : vector<64x22xi1>
    %cst_6 = arith.constant 0.000000e+00 : f32
    %21 = vector.broadcast %cst_6 : f32 to vector<64x22xf32>
    %22 = arith.maximumf %14, %21 : vector<64x22xf32>
    %cst_7 = arith.constant 0.000000e+00 : f32
    %23 = vector.broadcast %cst_7 : f32 to vector<64x22xf32>
    %24 = arith.select %20, %22, %23 : vector<64x22xi1>, vector<64x22xf32>
    %25 = vector.extract_strided_slice %24 {offsets = [0, 0], sizes = [64, 18], strides = [1, 1]} : vector<64x22xf32> to vector<64x18xf32>
    %26 = vector.extract_strided_slice %24 {offsets = [0, 1], sizes = [64, 18], strides = [1, 1]} : vector<64x22xf32> to vector<64x18xf32>
    %27 = vector.extract_strided_slice %24 {offsets = [0, 2], sizes = [64, 18], strides = [1, 1]} : vector<64x22xf32> to vector<64x18xf32>
    %28 = vector.extract_strided_slice %24 {offsets = [0, 3], sizes = [64, 18], strides = [1, 1]} : vector<64x22xf32> to vector<64x18xf32>
    %29 = vector.extract_strided_slice %24 {offsets = [0, 4], sizes = [64, 18], strides = [1, 1]} : vector<64x22xf32> to vector<64x18xf32>
    %30 = tpu.concatenate %25, %26, %27, %28, %29 in 0 : vector<64x18xf32>, vector<64x18xf32>, vector<64x18xf32>, vector<64x18xf32>, vector<64x18xf32> -> vector<320x18xf32>
    %c0_8 = arith.constant 0 : index
    %c0_9 = arith.constant 0 : index
    %31 = vector.load %arg4[%c0_8, %c0_9] : memref<64x320xbf16, #tpu.memory_space<vmem>>, vector<64x320xbf16>
    %32 = arith.truncf %30 : vector<320x18xf32> to vector<320x18xbf16>
    %cst_10 = arith.constant dense<0.000000e+00> : vector<64x18xf32>
    %33 = tpu.matmul %31, %32, %cst_10 {dimension_numbers = #tpu.dot_dimension_numbers<[1], [0], [0], [1], [0, 0, 1, 1], [], []>} : vector<64x320xbf16>, vector<320x18xbf16>, vector<64x18xf32> -> vector<64x18xf32>
    %c0_11 = arith.constant 0 : index
    %c0_12 = arith.constant 0 : index
    %34 = vector.load %arg5[%c0_11, %c0_12] : memref<64x1xf32, #tpu.memory_space<vmem>>, vector<64x1xf32>
    %35 = vector.broadcast %34 : vector<64x1xf32> to vector<64x18xf32>
    %36 = arith.addf %33, %35 : vector<64x18xf32>
    %37 = tpu.iota {dimensions = array<i32: 1>} : vector<64x18xi32>
    %c1_i32 = arith.constant 1 : i32
    %38 = vector.broadcast %c1_i32 : i32 to vector<64x18xi32>
    %39 = arith.cmpi sge, %37, %38 : vector<64x18xi32>
    %c17_i32 = arith.constant 17 : i32
    %40 = vector.broadcast %c17_i32 : i32 to vector<64x18xi32>
    %41 = arith.cmpi slt, %37, %40 : vector<64x18xi32>
    %42 = arith.andi %39, %41 : vector<64x18xi1>
    %cst_13 = arith.constant 0.000000e+00 : f32
    %43 = vector.broadcast %cst_13 : f32 to vector<64x18xf32>
    %44 = arith.maximumf %36, %43 : vector<64x18xf32>
    %cst_14 = arith.constant 0.000000e+00 : f32
    %45 = vector.broadcast %cst_14 : f32 to vector<64x18xf32>
    %46 = arith.select %42, %44, %45 : vector<64x18xi1>, vector<64x18xf32>
    %47 = vector.extract_strided_slice %46 {offsets = [0, 0], sizes = [64, 16], strides = [1, 1]} : vector<64x18xf32> to vector<64x16xf32>
    %48 = vector.extract_strided_slice %46 {offsets = [0, 1], sizes = [64, 16], strides = [1, 1]} : vector<64x18xf32> to vector<64x16xf32>
    %49 = vector.extract_strided_slice %46 {offsets = [0, 2], sizes = [64, 16], strides = [1, 1]} : vector<64x18xf32> to vector<64x16xf32>
    %50 = tpu.concatenate %47, %48, %49 in 0 : vector<64x16xf32>, vector<64x16xf32>, vector<64x16xf32> -> vector<192x16xf32>
    %c0_15 = arith.constant 0 : index
    %c0_16 = arith.constant 0 : index
    %51 = vector.load %arg6[%c0_15, %c0_16] : memref<64x192xbf16, #tpu.memory_space<vmem>>, vector<64x192xbf16>
    %52 = arith.truncf %50 : vector<192x16xf32> to vector<192x16xbf16>
    %cst_17 = arith.constant dense<0.000000e+00> : vector<64x16xf32>
    %53 = tpu.matmul %51, %52, %cst_17 {dimension_numbers = #tpu.dot_dimension_numbers<[1], [0], [0], [1], [0, 0, 1, 1], [], []>} : vector<64x192xbf16>, vector<192x16xbf16>, vector<64x16xf32> -> vector<64x16xf32>
    %c0_18 = arith.constant 0 : index
    %c0_19 = arith.constant 0 : index
    %54 = vector.load %arg7[%c0_18, %c0_19] : memref<64x1xf32, #tpu.memory_space<vmem>>, vector<64x1xf32>
    %55 = vector.broadcast %54 : vector<64x1xf32> to vector<64x16xf32>
    %56 = arith.addf %53, %55 : vector<64x16xf32>
    %cst_20 = arith.constant 0.000000e+00 : f32
    %57 = vector.broadcast %cst_20 : f32 to vector<64x16xf32>
    %58 = arith.maximumf %56, %57 : vector<64x16xf32>
    %59 = vector.extract_strided_slice %1 {offsets = [0, 6], sizes = [64, 16], strides = [1, 1]} : vector<64x28xbf16> to vector<64x16xbf16>
    %c0_21 = arith.constant 0 : index
    %c0_22 = arith.constant 0 : index
    %60 = vector.load %arg8[%c0_21, %c0_22] : memref<64x64xbf16, #tpu.memory_space<vmem>>, vector<64x64xbf16>
    %cst_23 = arith.constant dense<0.000000e+00> : vector<64x16xf32>
    %61 = tpu.matmul %60, %59, %cst_23 {dimension_numbers = #tpu.dot_dimension_numbers<[1], [0], [0], [1], [0, 0, 1, 1], [], []>} : vector<64x64xbf16>, vector<64x16xbf16>, vector<64x16xf32> -> vector<64x16xf32>
    %c0_24 = arith.constant 0 : index
    %c0_25 = arith.constant 0 : index
    %62 = vector.load %arg9[%c0_24, %c0_25] : memref<64x1xf32, #tpu.memory_space<vmem>>, vector<64x1xf32>
    %63 = vector.broadcast %62 : vector<64x1xf32> to vector<64x16xf32>
    %64 = arith.addf %61, %63 : vector<64x16xf32>
    %65 = arith.addf %58, %64 : vector<64x16xf32>
    %cst_26 = arith.constant 0.000000e+00 : f32
    %66 = vector.broadcast %cst_26 : f32 to vector<64x16xf32>
    %67 = arith.maximumf %65, %66 : vector<64x16xf32>
    %c0_27 = arith.constant 0 : index
    %c0_28 = arith.constant 0 : index
    %c0_29 = arith.constant 0 : index
    %68 = vector.load %arg10[%c0_27, %c0_28, %c0_29] : memref<1x64x16xf32, #tpu.memory_space<vmem>>, vector<1x64x16xf32>
    %69 = vector.shape_cast %68 : vector<1x64x16xf32> to vector<64x16xf32>
    %70 = vector.shape_cast %67 : vector<64x16xf32> to vector<1x64x16xf32>
    tpu.vector_store %arg10[%c0_27, %c0_28, %c0_29], %70 {strides = array<i32>} : memref<1x64x16xf32, #tpu.memory_space<vmem>>, vector<1x64x16xf32>,
    return
  }
  func.func @transform_0(%arg0: i32) -> (i32, i32, i32) {
    %c0_i32 = arith.constant 0 : i32
    %c0_i32_0 = arith.constant 0 : i32
    %c0_i32_1 = arith.constant 0 : i32
    return %arg0, %c0_i32, %c0_i32_0 : i32, i32, i32
  }
  func.func @transform_1(%arg0: i32) -> (i32, i32) {
    %c0_i32 = arith.constant 0 : i32
    %c0_i32_0 = arith.constant 0 : i32
    %c0_i32_1 = arith.constant 0 : i32
    return %c0_i32, %c0_i32_0 : i32, i32
  }
  func.func @transform_2(%arg0: i32) -> (i32, i32) {
    %c0_i32 = arith.constant 0 : i32
    %c0_i32_0 = arith.constant 0 : i32
    %c0_i32_1 = arith.constant 0 : i32
    return %c0_i32, %c0_i32_0 : i32, i32
  }
  func.func @transform_3(%arg0: i32) -> (i32, i32) {
    %c0_i32 = arith.constant 0 : i32
    %c0_i32_0 = arith.constant 0 : i32
    %c0_i32_1 = arith.constant 0 : i32
    return %c0_i32, %c0_i32_0 : i32, i32
  }
  func.func @transform_4(%arg0: i32) -> (i32, i32) {
    %c0_i32 = arith.constant 0 : i32
    %c0_i32_0 = arith.constant 0 : i32
    %c0_i32_1 = arith.constant 0 : i32
    return %c0_i32, %c0_i32_0 : i32, i32
  }
  func.func @transform_5(%arg0: i32) -> (i32, i32) {
    %c0_i32 = arith.constant 0 : i32
    %c0_i32_0 = arith.constant 0 : i32
    %c0_i32_1 = arith.constant 0 : i32
    return %c0_i32, %c0_i32_0 : i32, i32
  }
  func.func @transform_6(%arg0: i32) -> (i32, i32) {
    %c0_i32 = arith.constant 0 : i32
    %c0_i32_0 = arith.constant 0 : i32
    %c0_i32_1 = arith.constant 0 : i32
    return %c0_i32, %c0_i32_0 : i32, i32
  }
  func.func @transform_7(%arg0: i32) -> (i32, i32) {
    %c0_i32 = arith.constant 0 : i32
    %c0_i32_0 = arith.constant 0 : i32
    %c0_i32_1 = arith.constant 0 : i32
    return %c0_i32, %c0_i32_0 : i32, i32
  }
  func.func @transform_8(%arg0: i32) -> (i32, i32) {
    %c0_i32 = arith.constant 0 : i32
    %c0_i32_0 = arith.constant 0 : i32
    %c0_i32_1 = arith.constant 0 : i32
    return %c0_i32, %c0_i32_0 : i32, i32
  }
  func.func @transform_9(%arg0: i32) -> (i32, i32, i32) {
    %c0_i32 = arith.constant 0 : i32
    %c0_i32_0 = arith.constant 0 : i32
    %c0_i32_1 = arith.constant 0 : i32
    return %arg0, %c0_i32, %c0_i32_0 : i32, i32, i32
  }
}

</mosaic_0001>

<llo_original>
// kernel: tpu_custom_call.1
$region0: #{tpu_custom_call.1}
  #allocation0 [shape = 'u32[]', space=smem, size = 0x4, offset = 0x4, fixed_abs, tag = 'smem constant byte address 0x4 - core index']
  #allocation1 [shape = 'u32[144,128]{1,0:T(1,128)}', space=vmem, size = 0x12000, scoped, tag = 'internal scratch']
  %s0 = inlined_call_operand.vmem [shape: bf16[2,64,28], index: 0, kind: input, shape index: {}]
  %s1 = inlined_call_operand.vmem [shape: bf16[64,448], index: 1, kind: input, shape index: {}]
  %s2 = inlined_call_operand.vmem [shape: f32[64,1], index: 2, kind: input, shape index: {}]
  %s3 = inlined_call_operand.vmem [shape: bf16[64,320], index: 3, kind: input, shape index: {}]
  %s4 = inlined_call_operand.vmem [shape: f32[64,1], index: 4, kind: input, shape index: {}]
  %s5 = inlined_call_operand.vmem [shape: bf16[64,192], index: 5, kind: input, shape index: {}]
  %s6 = inlined_call_operand.vmem [shape: f32[64,1], index: 6, kind: input, shape index: {}]
  %s7 = inlined_call_operand.vmem [shape: bf16[64,64], index: 7, kind: input, shape index: {}]
  %s8 = inlined_call_operand.vmem [shape: f32[64,1], index: 8, kind: input, shape index: {}]
  %s9 = inlined_call_operand.vmem [shape: f32[2,64,16], index: 9, kind: output, shape index: {}]
  %s10 = sld [smem:[#allocation0]]
  $region69: #{tpu_custom_call.1} parent=0
    _
  %s12 = ssub.s32 1, %s10
  %s13 = scalar_select 0, %s12, %s10
  loop: start=0, step=1, limit=4
  $region2: #{tpu_custom_call.1} parent=0 // loop_pre_header
    _
  $region3: #{tpu_custom_call.1} parent=0 // loop_header
    %s15 = sphi 0, %s19
    %p16 = scmp.ge.s32.totalorder %s15, 4
    %s25 = sphi 0, %s27
    %s28 = sphi 0, %s25
    %s29 = sphi 0, %s28
    %s45 = sphi 0, %s29
    %s49 = sphi 0, %s49
    %s51 = sphi 0, %s49
    %s52 = sphi 0, %s51
    %s66 = sphi 0, %s52
    %s70 = sphi 0, %s70
    %s72 = sphi 0, %s70
    %s73 = sphi 0, %s72
    %s87 = sphi 0, %s73
    %s91 = sphi 0, %s91
    %s93 = sphi 0, %s91
    %s94 = sphi 0, %s93
    %s108 = sphi 0, %s94
    %s112 = sphi 0, %s112
    %s114 = sphi 0, %s112
    %s115 = sphi 0, %s114
    %s129 = sphi 0, %s115
    %s133 = sphi 0, %s133
    %s135 = sphi 0, %s133
    %s136 = sphi 0, %s135
    %s150 = sphi 0, %s136
    %s154 = sphi 0, %s154
    %s156 = sphi 0, %s154
    %s157 = sphi 0, %s156
    %s171 = sphi 0, %s157
    %s175 = sphi 0, %s175
    %s177 = sphi 0, %s175
    %s178 = sphi 0, %s177
    %s192 = sphi 0, %s178
    %s196 = sphi 0, %s196
    %s198 = sphi 0, %s196
    %s199 = sphi 0, %s198
    %s213 = sphi 0, %s199
    %s219 = sphi 0, %s221
    %s222 = sphi 0, %s219
    %s223 = sphi 0, %s222
    %s239 = sphi 0, %s223
  $region4: #{tpu_custom_call.1} parent=0 // loop_header_branch
    %18 = sbr.rel (%p16) target = $region8
  $region5: #{tpu_custom_call.1} parent=0 // loop_body
    %s20 = ssub.s32 %s15, 1
    %s21 = ssub.s32 %s15, 2
    %s22 = sadd.s32 %s15, 1
    %s23 = ssub.s32 %s15, %s22
    %p24 = scmp.eq.s32.totalorder %s23, 0
    %s26 = sadd.s32 %s25, 1
    %s27 = scalar_select %p24, %s25, %s26
    %p30 = pneg %p24
    %p31 = scmp.eq.s32.totalorder %s15, 1
    %p32 = por %p30, %p31
    %p33 = scmp.ne.s32.totalorder %s25, %s28
    %p34 = scmp.eq.s32.totalorder %s15, 0
    %p35 = por %p33, %p34
    %p36 = scmp.ne.s32.totalorder %s25, %s28
    %p37 = scmp.eq.s32.totalorder %s20, 1
    %p38 = por %p36, %p37
    %p39 = scmp.ne.s32.totalorder %s28, %s29
    %p40 = scmp.eq.s32.totalorder %s20, 0
    %p41 = por %p39, %p40
    %p42 = scmp.ne.s32.totalorder %s28, %s29
    %p43 = scmp.eq.s32.totalorder %s21, 1
    %p44 = por %p42, %p43
    %p46 = scmp.ne.s32.totalorder %s29, %s45
    %p47 = scmp.eq.s32.totalorder %s21, 0
    %p48 = por %p46, %p47
    %s50 = sadd.s32 %s49, 1
    %p53 = scmp.eq.s32.totalorder %s15, 1
    %p54 = scmp.ne.s32.totalorder %s49, %s51
    %p55 = scmp.eq.s32.totalorder %s15, 0
    %p56 = por %p54, %p55
    %p57 = scmp.ne.s32.totalorder %s49, %s51
    %p58 = scmp.eq.s32.totalorder %s20, 1
    %p59 = por %p57, %p58
    %p60 = scmp.ne.s32.totalorder %s51, %s52
    %p61 = scmp.eq.s32.totalorder %s20, 0
    %p62 = por %p60, %p61
    %p63 = scmp.ne.s32.totalorder %s51, %s52
    %p64 = scmp.eq.s32.totalorder %s21, 1
    %p65 = por %p63, %p64
    %p67 = scmp.ne.s32.totalorder %s52, %s66
    %p68 = scmp.eq.s32.totalorder %s21, 0
    %p69 = por %p67, %p68
    %s71 = sadd.s32 %s70, 1
    %p74 = scmp.eq.s32.totalorder %s15, 1
    %p75 = scmp.ne.s32.totalorder %s70, %s72
    %p76 = scmp.eq.s32.totalorder %s15, 0
    %p77 = por %p75, %p76
    %p78 = scmp.ne.s32.totalorder %s70, %s72
    %p79 = scmp.eq.s32.totalorder %s20, 1
    %p80 = por %p78, %p79
    %p81 = scmp.ne.s32.totalorder %s72, %s73
    %p82 = scmp.eq.s32.totalorder %s20, 0
    %p83 = por %p81, %p82
    %p84 = scmp.ne.s32.totalorder %s72, %s73
    %p85 = scmp.eq.s32.totalorder %s21, 1
    %p86 = por %p84, %p85
    %p88 = scmp.ne.s32.totalorder %s73, %s87
    %p89 = scmp.eq.s32.totalorder %s21, 0
    %p90 = por %p88, %p89
    %s92 = sadd.s32 %s91, 1
    %p95 = scmp.eq.s32.totalorder %s15, 1
    %p96 = scmp.ne.s32.totalorder %s91, %s93
    %p97 = scmp.eq.s32.totalorder %s15, 0
    %p98 = por %p96, %p97
    %p99 = scmp.ne.s32.totalorder %s91, %s93
    %p100 = scmp.eq.s32.totalorder %s20, 1
    %p101 = por %p99, %p100
    %p102 = scmp.ne.s32.totalorder %s93, %s94
    %p103 = scmp.eq.s32.totalorder %s20, 0
    %p104 = por %p102, %p103
    %p105 = scmp.ne.s32.totalorder %s93, %s94
    %p106 = scmp.eq.s32.totalorder %s21, 1
    %p107 = por %p105, %p106
    %p109 = scmp.ne.s32.totalorder %s94, %s108
    %p110 = scmp.eq.s32.totalorder %s21, 0
    %p111 = por %p109, %p110
    %s113 = sadd.s32 %s112, 1
    %p116 = scmp.eq.s32.totalorder %s15, 1
    %p117 = scmp.ne.s32.totalorder %s112, %s114
    %p118 = scmp.eq.s32.totalorder %s15, 0
    %p119 = por %p117, %p118
    %p120 = scmp.ne.s32.totalorder %s112, %s114
    %p121 = scmp.eq.s32.totalorder %s20, 1
    %p122 = por %p120, %p121
    %p123 = scmp.ne.s32.totalorder %s114, %s115
    %p124 = scmp.eq.s32.totalorder %s20, 0
    %p125 = por %p123, %p124
    %p126 = scmp.ne.s32.totalorder %s114, %s115
    %p127 = scmp.eq.s32.totalorder %s21, 1
    %p128 = por %p126, %p127
    %p130 = scmp.ne.s32.totalorder %s115, %s129
    %p131 = scmp.eq.s32.totalorder %s21, 0
    %p132 = por %p130, %p131
    %s134 = sadd.s32 %s133, 1
    %p137 = scmp.eq.s32.totalorder %s15, 1
    %p138 = scmp.ne.s32.totalorder %s133, %s135
    %p139 = scmp.eq.s32.totalorder %s15, 0
    %p140 = por %p138, %p139
    %p141 = scmp.ne.s32.totalorder %s133, %s135
    %p142 = scmp.eq.s32.totalorder %s20, 1
    %p143 = por %p141, %p142
    %p144 = scmp.ne.s32.totalorder %s135, %s136
    %p145 = scmp.eq.s32.totalorder %s20, 0
    %p146 = por %p144, %p145
    %p147 = scmp.ne.s32.totalorder %s135, %s136
    %p148 = scmp.eq.s32.totalorder %s21, 1
    %p149 = por %p147, %p148
    %p151 = scmp.ne.s32.totalorder %s136, %s150
    %p152 = scmp.eq.s32.totalorder %s21, 0
    %p153 = por %p151, %p152
    %s155 = sadd.s32 %s154, 1
    %p158 = scmp.eq.s32.totalorder %s15, 1
    %p159 = scmp.ne.s32.totalorder %s154, %s156
    %p160 = scmp.eq.s32.totalorder %s15, 0
    %p161 = por %p159, %p160
    %p162 = scmp.ne.s32.totalorder %s154, %s156
    %p163 = scmp.eq.s32.totalorder %s20, 1
    %p164 = por %p162, %p163
    %p165 = scmp.ne.s32.totalorder %s156, %s157
    %p166 = scmp.eq.s32.totalorder %s20, 0
    %p167 = por %p165, %p166
    %p168 = scmp.ne.s32.totalorder %s156, %s157
    %p169 = scmp.eq.s32.totalorder %s21, 1
    %p170 = por %p168, %p169
    %p172 = scmp.ne.s32.totalorder %s157, %s171
    %p173 = scmp.eq.s32.totalorder %s21, 0
    %p174 = por %p172, %p173
    %s176 = sadd.s32 %s175, 1
    %p179 = scmp.eq.s32.totalorder %s15, 1
    %p180 = scmp.ne.s32.totalorder %s175, %s177
    %p181 = scmp.eq.s32.totalorder %s15, 0
    %p182 = por %p180, %p181
    %p183 = scmp.ne.s32.totalorder %s175, %s177
    %p184 = scmp.eq.s32.totalorder %s20, 1
    %p185 = por %p183, %p184
    %p186 = scmp.ne.s32.totalorder %s177, %s178
    %p187 = scmp.eq.s32.totalorder %s20, 0
    %p188 = por %p186, %p187
    %p189 = scmp.ne.s32.totalorder %s177, %s178
    %p190 = scmp.eq.s32.totalorder %s21, 1
    %p191 = por %p189, %p190
    %p193 = scmp.ne.s32.totalorder %s178, %s192
    %p194 = scmp.eq.s32.totalorder %s21, 0
    %p195 = por %p193, %p194
    %s197 = sadd.s32 %s196, 1
    %p200 = scmp.eq.s32.totalorder %s15, 1
    %p201 = scmp.ne.s32.totalorder %s196, %s198
    %p202 = scmp.eq.s32.totalorder %s15, 0
    %p203 = por %p201, %p202
    %p204 = scmp.ne.s32.totalorder %s196, %s198
    %p205 = scmp.eq.s32.totalorder %s20, 1
    %p206 = por %p204, %p205
    %p207 = scmp.ne.s32.totalorder %s198, %s199
    %p208 = scmp.eq.s32.totalorder %s20, 0
    %p209 = por %p207, %p208
    %p210 = scmp.ne.s32.totalorder %s198, %s199
    %p211 = scmp.eq.s32.totalorder %s21, 1
    %p212 = por %p210, %p211
    %p214 = scmp.ne.s32.totalorder %s199, %s213
    %p215 = scmp.eq.s32.totalorder %s21, 0
    %p216 = por %p214, %p215
    %s217 = ssub.s32 %s15, %s22
    %p218 = scmp.eq.s32.totalorder %s217, 0
    %s220 = sadd.s32 %s219, 1
    %s221 = scalar_select %p218, %s219, %s220
    %p224 = pneg %p218
    %p225 = scmp.eq.s32.totalorder %s15, 1
    %p226 = por %p224, %p225
    %p227 = scmp.ne.s32.totalorder %s219, %s222
    %p228 = scmp.eq.s32.totalorder %s15, 0
    %p229 = por %p227, %p228
    %p230 = scmp.ne.s32.totalorder %s219, %s222
    %p231 = scmp.eq.s32.totalorder %s20, 1
    %p232 = por %p230, %p231
    %p233 = scmp.ne.s32.totalorder %s222, %s223
    %p234 = scmp.eq.s32.totalorder %s20, 0
    %p235 = por %p233, %p234
    %p236 = scmp.ne.s32.totalorder %s222, %s223
    %p237 = scmp.eq.s32.totalorder %s21, 1
    %p238 = por %p236, %p237
    %p240 = scmp.ne.s32.totalorder %s223, %s239
    %p241 = scmp.eq.s32.totalorder %s21, 0
    %p242 = por %p240, %p241
    %p243 = scmp.le.s32.totalorder 1, %s15
    %p244 = scmp.lt.s32.totalorder %s15, 3
    %p245 = pnand %p243, %p244
    %p246 = pneg %p245
    // Predicated region
    $region9: #{tpu_custom_call.1} parent=5 // pred_check
      _
    $region10: #{tpu_custom_call.1} parent=5 // pred_check_branch
      %248 = sbr.rel (%p245) target = $region12
    $region11: #{tpu_custom_call.1} parent=5 // pred_region
      %s249 = ssub.s32 %s15, 1
      // Predicated region
      $region13: #{tpu_custom_call.1} parent=11 // pred_check
        %p250 = pneg %p62
      $region14: #{tpu_custom_call.1} parent=11 // pred_check_branch
        %252 = sbr.rel (%p250) target = $region16
      $region15: #{tpu_custom_call.1} parent=11 // pred_region
        _
      $region16: #{tpu_custom_call.1} parent=11 // pred_fallthru
        _
      // Predicated region
      $region17: #{tpu_custom_call.1} parent=11 // pred_check
        %p253 = pneg %p83
      $region18: #{tpu_custom_call.1} parent=11 // pred_check_branch
        %255 = sbr.rel (%p253) target = $region20
      $region19: #{tpu_custom_call.1} parent=11 // pred_region
        _
      $region20: #{tpu_custom_call.1} parent=11 // pred_fallthru
        _
      // Predicated region
      $region21: #{tpu_custom_call.1} parent=11 // pred_check
        %p256 = pneg %p104
      $region22: #{tpu_custom_call.1} parent=11 // pred_check_branch
        %258 = sbr.rel (%p256) target = $region24
      $region23: #{tpu_custom_call.1} parent=11 // pred_region
        _
      $region24: #{tpu_custom_call.1} parent=11 // pred_fallthru
        _
      // Predicated region
      $region25: #{tpu_custom_call.1} parent=11 // pred_check
        %p259 = pneg %p125
      $region26: #{tpu_custom_call.1} parent=11 // pred_check_branch
        %261 = sbr.rel (%p259) target = $region28
      $region27: #{tpu_custom_call.1} parent=11 // pred_region
        _
      $region28: #{tpu_custom_call.1} parent=11 // pred_fallthru
        _
      // Predicated region
      $region29: #{tpu_custom_call.1} parent=11 // pred_check
        %p262 = pneg %p146
      $region30: #{tpu_custom_call.1} parent=11 // pred_check_branch
        %264 = sbr.rel (%p262) target = $region32
      $region31: #{tpu_custom_call.1} parent=11 // pred_region
        _
      $region32: #{tpu_custom_call.1} parent=11 // pred_fallthru
        _
      // Predicated region
      $region33: #{tpu_custom_call.1} parent=11 // pred_check
        %p265 = pneg %p167
      $region34: #{tpu_custom_call.1} parent=11 // pred_check_branch
        %267 = sbr.rel (%p265) target = $region36
      $region35: #{tpu_custom_call.1} parent=11 // pred_region
        _
      $region36: #{tpu_custom_call.1} parent=11 // pred_fallthru
        _
      // Predicated region
      $region37: #{tpu_custom_call.1} parent=11 // pred_check
        %p268 = pneg %p188
      $region38: #{tpu_custom_call.1} parent=11 // pred_check_branch
        %270 = sbr.rel (%p268) target = $region40
      $region39: #{tpu_custom_call.1} parent=11 // pred_region
        _
      $region40: #{tpu_custom_call.1} parent=11 // pred_fallthru
        _
      // Predicated region
      $region41: #{tpu_custom_call.1} parent=11 // pred_check
        %p271 = pneg %p209
      $region42: #{tpu_custom_call.1} parent=11 // pred_check_branch
        %273 = sbr.rel (%p271) target = $region44
      $region43: #{tpu_custom_call.1} parent=11 // pred_region
        _
      $region44: #{tpu_custom_call.1} parent=11 // pred_fallthru
        _
    $region12: #{tpu_custom_call.1} parent=5 // pred_fallthru
      _
    %p274 = scmp.lt.s32.totalorder %s15, 2
    // Predicated region
    $region45: #{tpu_custom_call.1} parent=5 // pred_check
      %p275 = pneg %p274
    $region46: #{tpu_custom_call.1} parent=5 // pred_check_branch
      %277 = sbr.rel (%p275) target = $region48
    $region47: #{tpu_custom_call.1} parent=5 // pred_region
      // Predicated region
      $region49: #{tpu_custom_call.1} parent=47 // pred_check
        %p278 = pneg %p35
      $region50: #{tpu_custom_call.1} parent=47 // pred_check_branch
        %280 = sbr.rel (%p278) target = $region52
      $region51: #{tpu_custom_call.1} parent=47 // pred_region
        %p281 = scmp.lt.s32.totalorder %s15, 1
        %s282 = scalar_select %p281, %s15, 1
        %s283 = smul.addr %s282, 8
        %s284 = smul.addr %s283, 4
        %s285 = scalar_lea.vmem %s0, %s284
      $region52: #{tpu_custom_call.1} parent=47 // pred_fallthru
        _
    $region48: #{tpu_custom_call.1} parent=5 // pred_fallthru
      _
    %p286 = scmp.le.s32.totalorder 1, %s15
    %p287 = scmp.lt.s32.totalorder %s15, 3
    %p288 = pnand %p286, %p287
    %p289 = pneg %p288
    // Predicated region
    $region53: #{tpu_custom_call.1} parent=5 // pred_check
      _
    $region54: #{tpu_custom_call.1} parent=5 // pred_check_branch
      %291 = sbr.rel (%p288) target = $region56
    $region55: #{tpu_custom_call.1} parent=5 // pred_region
      %s292 = ssub.s32 %s15, 1
      %p293 = scmp.lt.s32.totalorder %s20, 1
      %s294 = scalar_select %p293, %s20, 1
      %s295 = smul.addr %s294, 8
      %s296 = smul.addr %s295, 4
      %s297 = scalar_lea.vmem %s0, %s296
      %p298 = pneg %p41
      %p299 = pneg %p38
      %p300 = pneg %p62
      %p301 = pneg %p59
      %p302 = pneg %p83
      %p303 = pneg %p80
      %p304 = pneg %p104
      %p305 = pneg %p101
      %p306 = pneg %p125
      %p307 = pneg %p122
      %p308 = pneg %p146
      %p309 = pneg %p143
      %p310 = pneg %p167
      %p311 = pneg %p164
      %p312 = pneg %p188
      %p313 = pneg %p185
      %p314 = pneg %p209
      %p315 = pneg %p206
      %p316 = pneg %p235
      %p317 = pneg %p232
      %p318 = scmp.lt.s32.totalorder %s20, 1
      %s319 = scalar_select %p318, %s20, 1
      %s320 = smul.addr %s319, 8
      %s321 = smul.addr %s320, 8
      %s322 = scalar_lea.vmem %s9, %s321
      %p323 = scmp.lt.s32.totalorder %s20, 1
      %s324 = scalar_select %p323, %s20, 1
      %s325 = smul.addr %s324, 8
      %s326 = smul.addr %s325, 4
      %s327 = scalar_lea.vmem %s0, %s326
      %p328 = scmp.lt.s32.totalorder %s20, 1
      %s329 = scalar_select %p328, %s20, 1
      %s330 = smul.addr %s329, 8
      %s331 = smul.addr %s330, 8
      %s332 = scalar_lea.vmem %s9, %s331
      %v334 = vld [vmem:[%s327] sm:$0xf]
      %v335 = vld [vmem:[%s327 + $0x4] sm:$0xf]
      %v336 = vld [vmem:[%s327 + $0x8] sm:$0xf]
      %v337 = vld [vmem:[%s327 + $0xc] sm:$0xf]
      %v338 = vld [vmem:[%s327 + $0x10] sm:$0xf]
      %v339 = vld [vmem:[%s327 + $0x14] sm:$0xf]
      %v340 = vld [vmem:[%s327 + $0x18] sm:$0xf]
      %v341 = vld [vmem:[%s327 + $0x1c] sm:$0xf]
      %v350 = vunpack.c.l.b16 %v334
      %v351 = vunpack.c.l.b16 %v335
      %v352 = vunpack.c.l.b16 %v336
      %v353 = vunpack.c.l.b16 %v337
      %v354 = vunpack.c.l.b16 %v338
      %v355 = vunpack.c.l.b16 %v339
      %v356 = vunpack.c.l.b16 %v340
      %v357 = vunpack.c.l.b16 %v341
      %v358 = vpack.c.b16 %v351, %v350
      %v359 = vpack.c.b16 %v353, %v352
      %v360 = vpack.c.b16 %v355, %v354
      %v361 = vpack.c.b16 %v357, %v356
      %366 = vrot.lane.b32.xlu0 %v358, 127
      %v367 = vpop.permute.xlu0 %366
      %368 = vrot.lane.b32.xlu0 %v359, 127
      %v369 = vpop.permute.xlu0 %368
      %370 = vrot.lane.b32.xlu0 %v360, 127
      %v371 = vpop.permute.xlu0 %370
      %372 = vrot.lane.b32.xlu0 %v361, 127
      %v373 = vpop.permute.xlu0 %372
      %378 = vrot.lane.b32.xlu0 %v358, 126
      %v379 = vpop.permute.xlu0 %378
      %380 = vrot.lane.b32.xlu0 %v359, 126
      %v381 = vpop.permute.xlu0 %380
      %382 = vrot.lane.b32.xlu0 %v360, 126
      %v383 = vpop.permute.xlu0 %382
      %384 = vrot.lane.b32.xlu0 %v361, 126
      %v385 = vpop.permute.xlu0 %384
      %390 = vrot.lane.b32.xlu0 %v358, 125
      %v391 = vpop.permute.xlu0 %390
      %392 = vrot.lane.b32.xlu0 %v359, 125
      %v393 = vpop.permute.xlu0 %392
      %394 = vrot.lane.b32.xlu0 %v360, 125
      %v395 = vpop.permute.xlu0 %394
      %396 = vrot.lane.b32.xlu0 %v361, 125
      %v397 = vpop.permute.xlu0 %396
      %402 = vrot.lane.b32.xlu0 %v358, 124
      %v403 = vpop.permute.xlu0 %402
      %404 = vrot.lane.b32.xlu0 %v359, 124
      %v405 = vpop.permute.xlu0 %404
      %406 = vrot.lane.b32.xlu0 %v360, 124
      %v407 = vpop.permute.xlu0 %406
      %408 = vrot.lane.b32.xlu0 %v361, 124
      %v409 = vpop.permute.xlu0 %408
      %414 = vrot.lane.b32.xlu0 %v358, 123
      %v415 = vpop.permute.xlu0 %414
      %416 = vrot.lane.b32.xlu0 %v359, 123
      %v417 = vpop.permute.xlu0 %416
      %418 = vrot.lane.b32.xlu0 %v360, 123
      %v419 = vpop.permute.xlu0 %418
      %420 = vrot.lane.b32.xlu0 %v361, 123
      %v421 = vpop.permute.xlu0 %420
      %426 = vrot.lane.b32.xlu0 %v358, 122
      %v427 = vpop.permute.xlu0 %426
      %428 = vrot.lane.b32.xlu0 %v359, 122
      %v429 = vpop.permute.xlu0 %428
      %430 = vrot.lane.b32.xlu0 %v360, 122
      %v431 = vpop.permute.xlu0 %430
      %432 = vrot.lane.b32.xlu0 %v361, 122
      %v433 = vpop.permute.xlu0 %432
      %v438 = vld [vmem:[%s1] sm:$0xff]
      %v439 = vld [vmem:[%s1 + $0x8] sm:$0xff]
      %v440 = vld [vmem:[%s1 + $0x10] sm:$0xff]
      %v441 = vld [vmem:[%s1 + $0x18] sm:$0xff]
      %v442 = vld [vmem:[%s1 + $0x20] sm:$0xff]
      %v443 = vld [vmem:[%s1 + $0x28] sm:$0xff]
      %v444 = vld [vmem:[%s1 + $0x30] sm:$0xff]
      %v445 = vld [vmem:[%s1 + $0x38] sm:$0xff]
      %v446 = vld [vmem:[%s1 + $0x40] sm:$0xff]
      %v447 = vld [vmem:[%s1 + $0x48] sm:$0xff]
      %v448 = vld [vmem:[%s1 + $0x50] sm:$0xff]
      %v449 = vld [vmem:[%s1 + $0x58] sm:$0xff]
      %v450 = vld [vmem:[%s1 + $0x60] sm:$0xff]
      %v451 = vld [vmem:[%s1 + $0x68] sm:$0xff]
      %v452 = vld [vmem:[%s1 + $0x70] sm:$0xff]
      %v453 = vld [vmem:[%s1 + $0x78] sm:$0xff]
      %v454 = vld [vmem:[%s2] sm:$0xff]
      %v455 = vld [vmem:[%s2 + $0x8] sm:$0xff]
      %v456 = vld [vmem:[%s2 + $0x10] sm:$0xff]
      %v457 = vld [vmem:[%s2 + $0x18] sm:$0xff]
      %v458 = vld [vmem:[%s2 + $0x20] sm:$0xff]
      %v459 = vld [vmem:[%s2 + $0x28] sm:$0xff]
      %v460 = vld [vmem:[%s2 + $0x30] sm:$0xff]
      %v461 = vld [vmem:[%s2 + $0x38] sm:$0xff]
      %463 = vset.pattern.permute.xlu0 0
      %464 = vperm.xlu0 %463, %v454
      %v465 = vpop.permute.xlu0 %464
      %468 = vset.pattern.permute.xlu0 0
      %469 = vperm.xlu0 %468, %v455
      %v470 = vpop.permute.xlu0 %469
      %473 = vset.pattern.permute.xlu0 0
      %474 = vperm.xlu0 %473, %v456
      %v475 = vpop.permute.xlu0 %474
      %478 = vset.pattern.permute.xlu0 0
      %479 = vperm.xlu0 %478, %v457
      %v480 = vpop.permute.xlu0 %479
      %483 = vset.pattern.permute.xlu0 0
      %484 = vperm.xlu0 %483, %v458
      %v485 = vpop.permute.xlu0 %484
      %488 = vset.pattern.permute.xlu0 0
      %489 = vperm.xlu0 %488, %v459
      %v490 = vpop.permute.xlu0 %489
      %493 = vset.pattern.permute.xlu0 0
      %494 = vperm.xlu0 %493, %v460
      %v495 = vpop.permute.xlu0 %494
      %498 = vset.pattern.permute.xlu0 0
      %499 = vperm.xlu0 %498, %v461
      %v500 = vpop.permute.xlu0 %499
      %v518 = vunpack.c.l.b16 %v438
      %v519 = vunpack.c.h.b16 %v438
      %v520 = vunpack.c.l.b16 %v439
      %v521 = vunpack.c.h.b16 %v439
      %v522 = vunpack.c.l.b16 %v440
      %v523 = vunpack.c.h.b16 %v440
      %v524 = vunpack.c.l.b16 %v441
      %v525 = vunpack.c.h.b16 %v441
      %v526 = vunpack.c.l.b16 %v442
      %v527 = vunpack.c.h.b16 %v442
      %v528 = vunpack.c.l.b16 %v443
      %v529 = vunpack.c.h.b16 %v443
      %v530 = vunpack.c.l.b16 %v444
      %v531 = vunpack.c.h.b16 %v444
      %v532 = vunpack.c.l.b16 %v445
      %v533 = vunpack.c.h.b16 %v445
      %v534 = vunpack.c.l.b16 %v446
      %v535 = vunpack.c.h.b16 %v446
      %v536 = vunpack.c.l.b16 %v447
      %v537 = vunpack.c.h.b16 %v447
      %v538 = vunpack.c.l.b16 %v448
      %v539 = vunpack.c.h.b16 %v448
      %v540 = vunpack.c.l.b16 %v449
      %v541 = vunpack.c.h.b16 %v449
      %v542 = vunpack.c.l.b16 %v450
      %v543 = vunpack.c.h.b16 %v450
      %v544 = vunpack.c.l.b16 %v451
      %v545 = vunpack.c.h.b16 %v451
      %v546 = vunpack.c.l.b16 %v452
      %v547 = vunpack.c.h.b16 %v452
      %v548 = vunpack.c.l.b16 %v453
      %v549 = vunpack.c.h.b16 %v453
      %v550 = vpack.c.b16 %v522, %v518
      %v551 = vpack.c.b16 %v523, %v519
      %v552 = vpack.c.b16 %v524, %v520
      %v553 = vpack.c.b16 %v525, %v521
      %v554 = vpack.c.b16 %v530, %v526
      %v555 = vpack.c.b16 %v531, %v527
      %v556 = vpack.c.b16 %v532, %v528
      %v557 = vpack.c.b16 %v533, %v529
      %v558 = vpack.c.b16 %v538, %v534
      %v559 = vpack.c.b16 %v539, %v535
      %v560 = vpack.c.b16 %v540, %v536
      %v561 = vpack.c.b16 %v541, %v537
      %v562 = vpack.c.b16 %v546, %v542
      %v563 = vpack.c.b16 %v547, %v543
      %v564 = vpack.c.b16 %v548, %v544
      %v565 = vpack.c.b16 %v549, %v545
      %vm578 = vcmask 523264
      %v580 = vsel %vm578, %v553, 0
      %v583 = vsel %vm578, %v557, 0
      %v586 = vsel %vm578, %v561, 0
      %v589 = vsel %vm578, %v565, 0
      %591 = vmatprep.subr.bf16.mxu0 0
      %592 = vmatpush1.bf16.msra.mxu0 %v358
      %593 = vmatprep.subr.bf16.mxu0 0
      %594 = vmatpush1.bf16.msra.mxu0 %v359
      %595 = vmatprep.subr.bf16.mxu0 0
      %596 = vmatpush1.bf16.msra.mxu0 %v360
      %597 = vmatprep.subr.bf16.mxu0 0
      %598 = vmatpush1.bf16.msra.mxu0 %v361
      %599 = vmatprep.subr.bf16.mxu0 0
      %600 = vmatpush1.bf16.msra.mxu0 %v367
      %601 = vmatprep.subr.bf16.mxu0 0
      %602 = vmatpush1.bf16.msra.mxu0 %v369
      %603 = vmatprep.subr.bf16.mxu0 0
      %604 = vmatpush1.bf16.msra.mxu0 %v371
      %605 = vmatprep.subr.bf16.mxu0 0
      %606 = vmatpush1.bf16.msra.mxu0 %v373
      %607 = vmatprep.subr.bf16.mxu0 0
      %608 = vmatpush1.bf16.msra.mxu0 %v379
      %609 = vmatprep.subr.bf16.mxu0 0
      %610 = vmatpush1.bf16.msra.mxu0 %v381
      %611 = vmatprep.subr.bf16.mxu0 0
      %612 = vmatpush1.bf16.msra.mxu0 %v383
      %613 = vmatprep.subr.bf16.mxu0 0
      %614 = vmatpush1.bf16.msra.mxu0 %v385
      %615 = vmatprep.subr.bf16.mxu0 0
      %616 = vmatpush1.bf16.msra.mxu0 %v391
      %617 = vmatprep.subr.bf16.mxu0 0
      %618 = vmatpush1.bf16.msra.mxu0 %v393
      %619 = vmatprep.subr.bf16.mxu0 0
      %620 = vmatpush1.bf16.msra.mxu0 %v395
      %621 = vmatprep.subr.bf16.mxu0 0
      %622 = vmatpush1.bf16.msra.mxu0 %v397
      %623 = vmatprep.mubr.bf16.mxu0 %v551
      %624 = vmatmul.mubr.bf16.gmra.mrb[0].mxu0 %v550
      %v625 = vpop.f32.mrb[0].mxu0
      %v626 = vadd.f32 %v465, %v625
      %v627 = vpop.f32.mrb[0].mxu0
      %v628 = vpop.f32.mrb[0].mxu0
      %v629 = vadd.f32 %v470, %v628
      %v630 = vpop.f32.mrb[0].mxu0
      %631 = vmatprep.mubr.bf16.mxu0 %v555
      %632 = vmatmul.mubr.bf16.gmra.mrb[0].mxu0 %v554
      %v633 = vpop.f32.mrb[0].mxu0
      %v634 = vadd.f32 %v475, %v633
      %v635 = vpop.f32.mrb[0].mxu0
      %v636 = vpop.f32.mrb[0].mxu0
      %v637 = vadd.f32 %v480, %v636
      %v638 = vpop.f32.mrb[0].mxu0
      %639 = vmatprep.mubr.bf16.mxu0 %v559
      %640 = vmatmul.mubr.bf16.gmra.mrb[0].mxu0 %v558
      %v641 = vpop.f32.mrb[0].mxu0
      %v642 = vadd.f32 %v485, %v641
      %v643 = vpop.f32.mrb[0].mxu0
      %v644 = vpop.f32.mrb[0].mxu0
      %v645 = vadd.f32 %v490, %v644
      %v646 = vpop.f32.mrb[0].mxu0
      %647 = vmatprep.mubr.bf16.mxu0 %v563
      %648 = vmatmul.mubr.bf16.gmra.mrb[0].mxu0 %v562
      %v649 = vpop.f32.mrb[0].mxu0
      %v650 = vadd.f32 %v495, %v649
      %v651 = vpop.f32.mrb[0].mxu0
      %v652 = vpop.f32.mrb[0].mxu0
      %v653 = vadd.f32 %v500, %v652
      %v654 = vpop.f32.mrb[0].mxu0
      %655 = vdwg.mxu0
      %656 = vmatprep.subr.bf16.mxu0 0
      %657 = vmatpush1.bf16.msra.mxu0 %v403
      %658 = vmatprep.subr.bf16.mxu0 0
      %659 = vmatpush1.bf16.msra.mxu0 %v405
      %660 = vmatprep.subr.bf16.mxu0 0
      %661 = vmatpush1.bf16.msra.mxu0 %v407
      %662 = vmatprep.subr.bf16.mxu0 0
      %663 = vmatpush1.bf16.msra.mxu0 %v409
      %664 = vmatprep.subr.bf16.mxu0 0
      %665 = vmatpush1.bf16.msra.mxu0 %v415
      %666 = vmatprep.subr.bf16.mxu0 0
      %667 = vmatpush1.bf16.msra.mxu0 %v417
      %668 = vmatprep.subr.bf16.mxu0 0
      %669 = vmatpush1.bf16.msra.mxu0 %v419
      %670 = vmatprep.subr.bf16.mxu0 0
      %671 = vmatpush1.bf16.msra.mxu0 %v421
      %672 = vmatprep.subr.bf16.mxu0 0
      %673 = vmatpush1.bf16.msra.mxu0 %v427
      %674 = vmatprep.subr.bf16.mxu0 0
      %675 = vmatpush1.bf16.msra.mxu0 %v429
      %676 = vmatprep.subr.bf16.mxu0 0
      %677 = vmatpush1.bf16.msra.mxu0 %v431
      %678 = vmatprep.subr.bf16.mxu0 0
      %679 = vmatpush1.bf16.msra.mxu0 %v433
      %680 = vmatprep.subr.bf16.mxu0 0
      %681 = vmatpush1.bf16.msra.mxu0 0
      %682 = vmatprep.subr.bf16.mxu0 0
      %683 = vmatpush1.bf16.msra.mxu0 0
      %684 = vmatprep.subr.bf16.mxu0 0
      %685 = vmatpush1.bf16.msra.mxu0 0
      %686 = vmatprep.subr.bf16.mxu0 0
      %687 = vmatpush1.bf16.msra.mxu0 0
      %688 = vmatprep.mubr.bf16.mxu0 %v580
      %689 = vmatmul.mubr.bf16.gmra.mrb[0].mxu0 %v552
      %v690 = vpop.f32.mrb[0].mxu0
      %v691 = vadd.f32 %v626, %v690
      %v692 = vpop.f32.mrb[0].mxu0
      %v693 = vpop.f32.mrb[0].mxu0
      %v694 = vadd.f32 %v629, %v693
      %v695 = vpop.f32.mrb[0].mxu0
      %696 = vmatprep.mubr.bf16.mxu0 %v583
      %697 = vmatmul.mubr.bf16.gmra.mrb[0].mxu0 %v556
      %v698 = vpop.f32.mrb[0].mxu0
      %v699 = vadd.f32 %v634, %v698
      %v700 = vpop.f32.mrb[0].mxu0
      %v701 = vpop.f32.mrb[0].mxu0
      %v702 = vadd.f32 %v637, %v701
      %v703 = vpop.f32.mrb[0].mxu0
      %704 = vmatprep.mubr.bf16.mxu0 %v586
      %705 = vmatmul.mubr.bf16.gmra.mrb[0].mxu0 %v560
      %v706 = vpop.f32.mrb[0].mxu0
      %v707 = vadd.f32 %v642, %v706
      %v708 = vpop.f32.mrb[0].mxu0
      %v709 = vpop.f32.mrb[0].mxu0
      %v710 = vadd.f32 %v645, %v709
      %v711 = vpop.f32.mrb[0].mxu0
      %712 = vmatprep.mubr.bf16.mxu0 %v589
      %713 = vmatmul.mubr.bf16.gmra.mrb[0].mxu0 %v564
      %v714 = vpop.f32.mrb[0].mxu0
      %v715 = vadd.f32 %v650, %v714
      %v716 = vpop.f32.mrb[0].mxu0
      %v717 = vpop.f32.mrb[0].mxu0
      %v718 = vadd.f32 %v653, %v717
      %v719 = vpop.f32.mrb[0].mxu0
      %720 = vdwg.mxu0
      %v721 = vlaneseq
      %v722 = vand.u32 %v721, 127
      %vm723 = vcmp.ge.s32.totalorder %v722, 3
      %vm724 = vcmp.lt.s32.totalorder %v722, 19
      %vm725 = vmand %vm723, %vm724
      %v726 = vmax.f32 %v691, 0.0
      %v727 = vmax.f32 %v694, 0.0
      %v728 = vmax.f32 %v699, 0.0
      %v729 = vmax.f32 %v702, 0.0
      %v730 = vmax.f32 %v707, 0.0
      %v731 = vmax.f32 %v710, 0.0
      %v732 = vmax.f32 %v715, 0.0
      %v733 = vmax.f32 %v718, 0.0
      %v734 = vsel %vm725, %v726, 0.0
      %v735 = vsel %vm725, %v727, 0.0
      %v736 = vsel %vm725, %v728, 0.0
      %v737 = vsel %vm725, %v729, 0.0
      %v738 = vsel %vm725, %v730, 0.0
      %v739 = vsel %vm725, %v731, 0.0
      %v740 = vsel %vm725, %v732, 0.0
      %v741 = vsel %vm725, %v733, 0.0
      %750 = vrot.lane.b32.xlu0 %v734, 127
      %v751 = vpop.permute.xlu0 %750
      %752 = vrot.lane.b32.xlu0 %v735, 127
      %v753 = vpop.permute.xlu0 %752
      %754 = vrot.lane.b32.xlu0 %v736, 127
      %v755 = vpop.permute.xlu0 %754
      %756 = vrot.lane.b32.xlu0 %v737, 127
      %v757 = vpop.permute.xlu0 %756
      %758 = vrot.lane.b32.xlu0 %v738, 127
      %v759 = vpop.permute.xlu0 %758
      %760 = vrot.lane.b32.xlu0 %v739, 127
      %v761 = vpop.permute.xlu0 %760
      %762 = vrot.lane.b32.xlu0 %v740, 127
      %v763 = vpop.permute.xlu0 %762
      %764 = vrot.lane.b32.xlu0 %v741, 127
      %v765 = vpop.permute.xlu0 %764
      %774 = vrot.lane.b32.xlu0 %v734, 126
      %v775 = vpop.permute.xlu0 %774
      %776 = vrot.lane.b32.xlu0 %v735, 126
      %v777 = vpop.permute.xlu0 %776
      %778 = vrot.lane.b32.xlu0 %v736, 126
      %v779 = vpop.permute.xlu0 %778
      %780 = vrot.lane.b32.xlu0 %v737, 126
      %v781 = vpop.permute.xlu0 %780
      %782 = vrot.lane.b32.xlu0 %v738, 126
      %v783 = vpop.permute.xlu0 %782
      %784 = vrot.lane.b32.xlu0 %v739, 126
      %v785 = vpop.permute.xlu0 %784
      %786 = vrot.lane.b32.xlu0 %v740, 126
      %v787 = vpop.permute.xlu0 %786
      %788 = vrot.lane.b32.xlu0 %v741, 126
      %v789 = vpop.permute.xlu0 %788
      %798 = vrot.lane.b32.xlu0 %v734, 125
      %v799 = vpop.permute.xlu0 %798
      %800 = vrot.lane.b32.xlu0 %v735, 125
      %v801 = vpop.permute.xlu0 %800
      %802 = vrot.lane.b32.xlu0 %v736, 125
      %v803 = vpop.permute.xlu0 %802
      %804 = vrot.lane.b32.xlu0 %v737, 125
      %v805 = vpop.permute.xlu0 %804
      %806 = vrot.lane.b32.xlu0 %v738, 125
      %v807 = vpop.permute.xlu0 %806
      %808 = vrot.lane.b32.xlu0 %v739, 125
      %v809 = vpop.permute.xlu0 %808
      %810 = vrot.lane.b32.xlu0 %v740, 125
      %v811 = vpop.permute.xlu0 %810
      %812 = vrot.lane.b32.xlu0 %v741, 125
      %v813 = vpop.permute.xlu0 %812
      %822 = vrot.lane.b32.xlu0 %v734, 124
      %v823 = vpop.permute.xlu0 %822
      %824 = vrot.lane.b32.xlu0 %v735, 124
      %v825 = vpop.permute.xlu0 %824
      %826 = vrot.lane.b32.xlu0 %v736, 124
      %v827 = vpop.permute.xlu0 %826
      %828 = vrot.lane.b32.xlu0 %v737, 124
      %v829 = vpop.permute.xlu0 %828
      %830 = vrot.lane.b32.xlu0 %v738, 124
      %v831 = vpop.permute.xlu0 %830
      %832 = vrot.lane.b32.xlu0 %v739, 124
      %v833 = vpop.permute.xlu0 %832
      %834 = vrot.lane.b32.xlu0 %v740, 124
      %v835 = vpop.permute.xlu0 %834
      %836 = vrot.lane.b32.xlu0 %v741, 124
      %v837 = vpop.permute.xlu0 %836
      %v846 = vld [vmem:[%s3] sm:$0xff]
      %v847 = vld [vmem:[%s3 + $0x8] sm:$0xf]
      %v848 = vld [vmem:[%s3 + $0xc] sm:$0xff]
      %v849 = vld [vmem:[%s3 + $0x14] sm:$0xf]
      %v850 = vld [vmem:[%s3 + $0x18] sm:$0xff]
      %v851 = vld [vmem:[%s3 + $0x20] sm:$0xf]
      %v852 = vld [vmem:[%s3 + $0x24] sm:$0xff]
      %v853 = vld [vmem:[%s3 + $0x2c] sm:$0xf]
      %v854 = vld [vmem:[%s3 + $0x30] sm:$0xff]
      %v855 = vld [vmem:[%s3 + $0x38] sm:$0xf]
      %v856 = vld [vmem:[%s3 + $0x3c] sm:$0xff]
      %v857 = vld [vmem:[%s3 + $0x44] sm:$0xf]
      %v858 = vld [vmem:[%s3 + $0x48] sm:$0xff]
      %v859 = vld [vmem:[%s3 + $0x50] sm:$0xf]
      %v860 = vld [vmem:[%s3 + $0x54] sm:$0xff]
      %v861 = vld [vmem:[%s3 + $0x5c] sm:$0xf]
      %v862 = vpack.c.bf16 %v735, %v734
      %v863 = vpack.c.bf16 %v737, %v736
      %v864 = vpack.c.bf16 %v739, %v738
      %v865 = vpack.c.bf16 %v741, %v740
      %v866 = vpack.c.bf16 %v753, %v751
      %v867 = vpack.c.bf16 %v757, %v755
      %v868 = vpack.c.bf16 %v761, %v759
      %v869 = vpack.c.bf16 %v765, %v763
      %v870 = vpack.c.bf16 %v777, %v775
      %v871 = vpack.c.bf16 %v781, %v779
      %v872 = vpack.c.bf16 %v785, %v783
      %v873 = vpack.c.bf16 %v789, %v787
      %v874 = vpack.c.bf16 %v801, %v799
      %v875 = vpack.c.bf16 %v805, %v803
      %v876 = vpack.c.bf16 %v809, %v807
      %v877 = vpack.c.bf16 %v813, %v811
      %v878 = vpack.c.bf16 %v825, %v823
      %v879 = vpack.c.bf16 %v829, %v827
      %v880 = vpack.c.bf16 %v833, %v831
      %v881 = vpack.c.bf16 %v837, %v835
      %v882 = vld [vmem:[%s4] sm:$0xff]
      %v883 = vld [vmem:[%s4 + $0x8] sm:$0xff]
      %v884 = vld [vmem:[%s4 + $0x10] sm:$0xff]
      %v885 = vld [vmem:[%s4 + $0x18] sm:$0xff]
      %v886 = vld [vmem:[%s4 + $0x20] sm:$0xff]
      %v887 = vld [vmem:[%s4 + $0x28] sm:$0xff]
      %v888 = vld [vmem:[%s4 + $0x30] sm:$0xff]
      %v889 = vld [vmem:[%s4 + $0x38] sm:$0xff]
      %891 = vset.pattern.permute.xlu0 0
      %892 = vperm.xlu0 %891, %v882
      %v893 = vpop.permute.xlu0 %892
      %896 = vset.pattern.permute.xlu0 0
      %897 = vperm.xlu0 %896, %v883
      %v898 = vpop.permute.xlu0 %897
      %901 = vset.pattern.permute.xlu0 0
      %902 = vperm.xlu0 %901, %v884
      %v903 = vpop.permute.xlu0 %902
      %906 = vset.pattern.permute.xlu0 0
      %907 = vperm.xlu0 %906, %v885
      %v908 = vpop.permute.xlu0 %907
      %911 = vset.pattern.permute.xlu0 0
      %912 = vperm.xlu0 %911, %v886
      %v913 = vpop.permute.xlu0 %912
      %916 = vset.pattern.permute.xlu0 0
      %917 = vperm.xlu0 %916, %v887
      %v918 = vpop.permute.xlu0 %917
      %921 = vset.pattern.permute.xlu0 0
      %922 = vperm.xlu0 %921, %v888
      %v923 = vpop.permute.xlu0 %922
      %926 = vset.pattern.permute.xlu0 0
      %927 = vperm.xlu0 %926, %v889
      %v928 = vpop.permute.xlu0 %927
      %v946 = vunpack.c.l.b16 %v846
      %v947 = vunpack.c.h.b16 %v846
      %v948 = vunpack.c.l.b16 %v847
      %v949 = vunpack.c.l.b16 %v848
      %v950 = vunpack.c.h.b16 %v848
      %v951 = vunpack.c.l.b16 %v849
      %v952 = vunpack.c.l.b16 %v850
      %v953 = vunpack.c.h.b16 %v850
      %v954 = vunpack.c.l.b16 %v851
      %v955 = vunpack.c.l.b16 %v852
      %v956 = vunpack.c.h.b16 %v852
      %v957 = vunpack.c.l.b16 %v853
      %v958 = vunpack.c.l.b16 %v854
      %v959 = vunpack.c.h.b16 %v854
      %v960 = vunpack.c.l.b16 %v855
      %v961 = vunpack.c.l.b16 %v856
      %v962 = vunpack.c.h.b16 %v856
      %v963 = vunpack.c.l.b16 %v857
      %v964 = vunpack.c.l.b16 %v858
      %v965 = vunpack.c.h.b16 %v858
      %v966 = vunpack.c.l.b16 %v859
      %v967 = vunpack.c.l.b16 %v860
      %v968 = vunpack.c.h.b16 %v860
      %v969 = vunpack.c.l.b16 %v861
      %v970 = vpack.c.b16 %v949, %v946
      %v971 = vpack.c.b16 %v950, %v947
      %v972 = vpack.c.b16 %v951, %v948
      %v973 = vpack.c.b16 %v955, %v952
      %v974 = vpack.c.b16 %v956, %v953
      %v975 = vpack.c.b16 %v957, %v954
      %v976 = vpack.c.b16 %v961, %v958
      %v977 = vpack.c.b16 %v962, %v959
      %v978 = vpack.c.b16 %v963, %v960
      %v979 = vpack.c.b16 %v967, %v964
      %v980 = vpack.c.b16 %v968, %v965
      %v981 = vpack.c.b16 %v969, %v966
      %v991 = vsel %vm578, %v972, 0
      %v994 = vsel %vm578, %v975, 0
      %v997 = vsel %vm578, %v978, 0
      %v1000 = vsel %vm578, %v981, 0
      %1002 = vmatprep.subr.bf16.mxu0 0
      %1003 = vmatpush1.bf16.msra.mxu0 %v862
      %1004 = vmatprep.subr.bf16.mxu0 0
      %1005 = vmatpush1.bf16.msra.mxu0 %v863
      %1006 = vmatprep.subr.bf16.mxu0 0
      %1007 = vmatpush1.bf16.msra.mxu0 %v864
      %1008 = vmatprep.subr.bf16.mxu0 0
      %1009 = vmatpush1.bf16.msra.mxu0 %v865
      %1010 = vmatprep.subr.bf16.mxu0 0
      %1011 = vmatpush1.bf16.msra.mxu0 %v866
      %1012 = vmatprep.subr.bf16.mxu0 0
      %1013 = vmatpush1.bf16.msra.mxu0 %v867
      %1014 = vmatprep.subr.bf16.mxu0 0
      %1015 = vmatpush1.bf16.msra.mxu0 %v868
      %1016 = vmatprep.subr.bf16.mxu0 0
      %1017 = vmatpush1.bf16.msra.mxu0 %v869
      %1018 = vmatprep.subr.bf16.mxu0 0
      %1019 = vmatpush1.bf16.msra.mxu0 %v870
      %1020 = vmatprep.subr.bf16.mxu0 0
      %1021 = vmatpush1.bf16.msra.mxu0 %v871
      %1022 = vmatprep.subr.bf16.mxu0 0
      %1023 = vmatpush1.bf16.msra.mxu0 %v872
      %1024 = vmatprep.subr.bf16.mxu0 0
      %1025 = vmatpush1.bf16.msra.mxu0 %v873
      %1026 = vmatprep.subr.bf16.mxu0 0
      %1027 = vmatpush1.bf16.msra.mxu0 %v874
      %1028 = vmatprep.subr.bf16.mxu0 0
      %1029 = vmatpush1.bf16.msra.mxu0 %v875
      %1030 = vmatprep.subr.bf16.mxu0 0
      %1031 = vmatpush1.bf16.msra.mxu0 %v876
      %1032 = vmatprep.subr.bf16.mxu0 0
      %1033 = vmatpush1.bf16.msra.mxu0 %v877
      %1034 = vmatprep.mubr.bf16.mxu0 %v971
      %1035 = vmatmul.mubr.bf16.gmra.mrb[0].mxu0 %v970
      %v1036 = vpop.f32.mrb[0].mxu0
      %v1037 = vadd.f32 %v893, %v1036
      %v1038 = vpop.f32.mrb[0].mxu0
      %v1039 = vpop.f32.mrb[0].mxu0
      %v1040 = vadd.f32 %v898, %v1039
      %v1041 = vpop.f32.mrb[0].mxu0
      %1042 = vmatprep.mubr.bf16.mxu0 %v974
      %1043 = vmatmul.mubr.bf16.gmra.mrb[0].mxu0 %v973
      %v1044 = vpop.f32.mrb[0].mxu0
      %v1045 = vadd.f32 %v903, %v1044
      %v1046 = vpop.f32.mrb[0].mxu0
      %v1047 = vpop.f32.mrb[0].mxu0
      %v1048 = vadd.f32 %v908, %v1047
      %v1049 = vpop.f32.mrb[0].mxu0
      %1050 = vmatprep.mubr.bf16.mxu0 %v977
      %1051 = vmatmul.mubr.bf16.gmra.mrb[0].mxu0 %v976
      %v1052 = vpop.f32.mrb[0].mxu0
      %v1053 = vadd.f32 %v913, %v1052
      %v1054 = vpop.f32.mrb[0].mxu0
      %v1055 = vpop.f32.mrb[0].mxu0
      %v1056 = vadd.f32 %v918, %v1055
      %v1057 = vpop.f32.mrb[0].mxu0
      %1058 = vmatprep.mubr.bf16.mxu0 %v980
      %1059 = vmatmul.mubr.bf16.gmra.mrb[0].mxu0 %v979
      %v1060 = vpop.f32.mrb[0].mxu0
      %v1061 = vadd.f32 %v923, %v1060
      %v1062 = vpop.f32.mrb[0].mxu0
      %v1063 = vpop.f32.mrb[0].mxu0
      %v1064 = vadd.f32 %v928, %v1063
      %v1065 = vpop.f32.mrb[0].mxu0
      %1066 = vdwg.mxu0
      %1067 = vmatprep.subr.bf16.mxu0 0
      %1068 = vmatpush1.bf16.msra.mxu0 %v878
      %1069 = vmatprep.subr.bf16.mxu0 0
      %1070 = vmatpush1.bf16.msra.mxu0 %v879
      %1071 = vmatprep.subr.bf16.mxu0 0
      %1072 = vmatpush1.bf16.msra.mxu0 %v880
      %1073 = vmatprep.subr.bf16.mxu0 0
      %1074 = vmatpush1.bf16.msra.mxu0 %v881
      %1075 = vmatprep.subr.bf16.mxu0 0
      %1076 = vmatpush1.bf16.msra.mxu0 0
      %1077 = vmatprep.subr.bf16.mxu0 0
      %1078 = vmatpush1.bf16.msra.mxu0 0
      %1079 = vmatprep.subr.bf16.mxu0 0
      %1080 = vmatpush1.bf16.msra.mxu0 0
      %1081 = vmatprep.subr.bf16.mxu0 0
      %1082 = vmatpush1.bf16.msra.mxu0 0
      %1083 = vmatprep.subr.bf16.mxu0 0
      %1084 = vmatpush1.bf16.msra.mxu0 0
      %1085 = vmatprep.subr.bf16.mxu0 0
      %1086 = vmatpush1.bf16.msra.mxu0 0
      %1087 = vmatprep.subr.bf16.mxu0 0
      %1088 = vmatpush1.bf16.msra.mxu0 0
      %1089 = vmatprep.subr.bf16.mxu0 0
      %1090 = vmatpush1.bf16.msra.mxu0 0
      %1091 = vmatprep.subr.bf16.mxu0 0
      %1092 = vmatpush1.bf16.msra.mxu0 0
      %1093 = vmatprep.subr.bf16.mxu0 0
      %1094 = vmatpush1.bf16.msra.mxu0 0
      %1095 = vmatprep.subr.bf16.mxu0 0
      %1096 = vmatpush1.bf16.msra.mxu0 0
      %1097 = vmatprep.subr.bf16.mxu0 0
      %1098 = vmatpush1.bf16.msra.mxu0 0
      %1099 = vmatprep.mubr.bf16.mxu0 0
      %1100 = vmatmul.mubr.bf16.gmra.mrb[0].mxu0 %v991
      %v1101 = vpop.f32.mrb[0].mxu0
      %v1102 = vadd.f32 %v1037, %v1101
      %v1103 = vpop.f32.mrb[0].mxu0
      %v1104 = vpop.f32.mrb[0].mxu0
      %v1105 = vadd.f32 %v1040, %v1104
      %v1106 = vpop.f32.mrb[0].mxu0
      %1107 = vmatprep.mubr.bf16.mxu0 0
      %1108 = vmatmul.mubr.bf16.gmra.mrb[0].mxu0 %v994
      %v1109 = vpop.f32.mrb[0].mxu0
      %v1110 = vadd.f32 %v1045, %v1109
      %v1111 = vpop.f32.mrb[0].mxu0
      %v1112 = vpop.f32.mrb[0].mxu0
      %v1113 = vadd.f32 %v1048, %v1112
      %v1114 = vpop.f32.mrb[0].mxu0
      %1115 = vmatprep.mubr.bf16.mxu0 0
      %1116 = vmatmul.mubr.bf16.gmra.mrb[0].mxu0 %v997
      %v1117 = vpop.f32.mrb[0].mxu0
      %v1118 = vadd.f32 %v1053, %v1117
      %v1119 = vpop.f32.mrb[0].mxu0
      %v1120 = vpop.f32.mrb[0].mxu0
      %v1121 = vadd.f32 %v1056, %v1120
      %v1122 = vpop.f32.mrb[0].mxu0
      %1123 = vmatprep.mubr.bf16.mxu0 0
      %1124 = vmatmul.mubr.bf16.gmra.mrb[0].mxu0 %v1000
      %v1125 = vpop.f32.mrb[0].mxu0
      %v1126 = vadd.f32 %v1061, %v1125
      %v1127 = vpop.f32.mrb[0].mxu0
      %v1128 = vpop.f32.mrb[0].mxu0
      %v1129 = vadd.f32 %v1064, %v1128
      %v1130 = vpop.f32.mrb[0].mxu0
      %1131 = vdwg.mxu0
      %vm1132 = vcmp.ge.s32.totalorder %v722, 1
      %vm1133 = vcmp.lt.s32.totalorder %v722, 17
      %vm1134 = vmand %vm1132, %vm1133
      %v1135 = vmax.f32 %v1102, 0.0
      %v1136 = vmax.f32 %v1105, 0.0
      %v1137 = vmax.f32 %v1110, 0.0
      %v1138 = vmax.f32 %v1113, 0.0
      %v1139 = vmax.f32 %v1118, 0.0
      %v1140 = vmax.f32 %v1121, 0.0
      %v1141 = vmax.f32 %v1126, 0.0
      %v1142 = vmax.f32 %v1129, 0.0
      %v1143 = vsel %vm1134, %v1135, 0.0
      %v1144 = vsel %vm1134, %v1136, 0.0
      %v1145 = vsel %vm1134, %v1137, 0.0
      %v1146 = vsel %vm1134, %v1138, 0.0
      %v1147 = vsel %vm1134, %v1139, 0.0
      %v1148 = vsel %vm1134, %v1140, 0.0
      %v1149 = vsel %vm1134, %v1141, 0.0
      %v1150 = vsel %vm1134, %v1142, 0.0
      %1159 = vrot.lane.b32.xlu0 %v1143, 127
      %v1160 = vpop.permute.xlu0 %1159
      %1161 = vrot.lane.b32.xlu0 %v1144, 127
      %v1162 = vpop.permute.xlu0 %1161
      %1163 = vrot.lane.b32.xlu0 %v1145, 127
      %v1164 = vpop.permute.xlu0 %1163
      %1165 = vrot.lane.b32.xlu0 %v1146, 127
      %v1166 = vpop.permute.xlu0 %1165
      %1167 = vrot.lane.b32.xlu0 %v1147, 127
      %v1168 = vpop.permute.xlu0 %1167
      %1169 = vrot.lane.b32.xlu0 %v1148, 127
      %v1170 = vpop.permute.xlu0 %1169
      %1171 = vrot.lane.b32.xlu0 %v1149, 127
      %v1172 = vpop.permute.xlu0 %1171
      %1173 = vrot.lane.b32.xlu0 %v1150, 127
      %v1174 = vpop.permute.xlu0 %1173
      %1183 = vrot.lane.b32.xlu0 %v1143, 126
      %v1184 = vpop.permute.xlu0 %1183
      %1185 = vrot.lane.b32.xlu0 %v1144, 126
      %v1186 = vpop.permute.xlu0 %1185
      %1187 = vrot.lane.b32.xlu0 %v1145, 126
      %v1188 = vpop.permute.xlu0 %1187
      %1189 = vrot.lane.b32.xlu0 %v1146, 126
      %v1190 = vpop.permute.xlu0 %1189
      %1191 = vrot.lane.b32.xlu0 %v1147, 126
      %v1192 = vpop.permute.xlu0 %1191
      %1193 = vrot.lane.b32.xlu0 %v1148, 126
      %v1194 = vpop.permute.xlu0 %1193
      %1195 = vrot.lane.b32.xlu0 %v1149, 126
      %v1196 = vpop.permute.xlu0 %1195
      %1197 = vrot.lane.b32.xlu0 %v1150, 126
      %v1198 = vpop.permute.xlu0 %1197
      %v1207 = vld [vmem:[%s5] sm:$0xff]
      %v1208 = vld [vmem:[%s5 + $0x8] sm:$0xff]
      %v1209 = vld [vmem:[%s5 + $0x10] sm:$0xff]
      %v1210 = vld [vmem:[%s5 + $0x18] sm:$0xff]
      %v1211 = vld [vmem:[%s5 + $0x20] sm:$0xff]
      %v1212 = vld [vmem:[%s5 + $0x28] sm:$0xff]
      %v1213 = vld [vmem:[%s5 + $0x30] sm:$0xff]
      %v1214 = vld [vmem:[%s5 + $0x38] sm:$0xff]
      %v1215 = vpack.c.bf16 %v1144, %v1143
      %v1216 = vpack.c.bf16 %v1146, %v1145
      %v1217 = vpack.c.bf16 %v1148, %v1147
      %v1218 = vpack.c.bf16 %v1150, %v1149
      %v1219 = vpack.c.bf16 %v1162, %v1160
      %v1220 = vpack.c.bf16 %v1166, %v1164
      %v1221 = vpack.c.bf16 %v1170, %v1168
      %v1222 = vpack.c.bf16 %v1174, %v1172
      %v1223 = vpack.c.bf16 %v1186, %v1184
      %v1224 = vpack.c.bf16 %v1190, %v1188
      %v1225 = vpack.c.bf16 %v1194, %v1192
      %v1226 = vpack.c.bf16 %v1198, %v1196
      %v1227 = vld [vmem:[%s6] sm:$0xff]
      %v1228 = vld [vmem:[%s6 + $0x8] sm:$0xff]
      %v1229 = vld [vmem:[%s6 + $0x10] sm:$0xff]
      %v1230 = vld [vmem:[%s6 + $0x18] sm:$0xff]
      %v1231 = vld [vmem:[%s6 + $0x20] sm:$0xff]
      %v1232 = vld [vmem:[%s6 + $0x28] sm:$0xff]
      %v1233 = vld [vmem:[%s6 + $0x30] sm:$0xff]
      %v1234 = vld [vmem:[%s6 + $0x38] sm:$0xff]
      %1236 = vset.pattern.permute.xlu0 0
      %1237 = vperm.xlu0 %1236, %v1227
      %v1238 = vpop.permute.xlu0 %1237
      %1241 = vset.pattern.permute.xlu0 0
      %1242 = vperm.xlu0 %1241, %v1228
      %v1243 = vpop.permute.xlu0 %1242
      %1246 = vset.pattern.permute.xlu0 0
      %1247 = vperm.xlu0 %1246, %v1229
      %v1248 = vpop.permute.xlu0 %1247
      %1251 = vset.pattern.permute.xlu0 0
      %1252 = vperm.xlu0 %1251, %v1230
      %v1253 = vpop.permute.xlu0 %1252
      %1256 = vset.pattern.permute.xlu0 0
      %1257 = vperm.xlu0 %1256, %v1231
      %v1258 = vpop.permute.xlu0 %1257
      %1261 = vset.pattern.permute.xlu0 0
      %1262 = vperm.xlu0 %1261, %v1232
      %v1263 = vpop.permute.xlu0 %1262
      %1266 = vset.pattern.permute.xlu0 0
      %1267 = vperm.xlu0 %1266, %v1233
      %v1268 = vpop.permute.xlu0 %1267
      %1271 = vset.pattern.permute.xlu0 0
      %1272 = vperm.xlu0 %1271, %v1234
      %v1273 = vpop.permute.xlu0 %1272
      %v1283 = vunpack.c.l.b16 %v1207
      %v1284 = vunpack.c.h.b16 %v1207
      %v1285 = vunpack.c.l.b16 %v1208
      %v1286 = vunpack.c.h.b16 %v1208
      %v1287 = vunpack.c.l.b16 %v1209
      %v1288 = vunpack.c.h.b16 %v1209
      %v1289 = vunpack.c.l.b16 %v1210
      %v1290 = vunpack.c.h.b16 %v1210
      %v1291 = vunpack.c.l.b16 %v1211
      %v1292 = vunpack.c.h.b16 %v1211
      %v1293 = vunpack.c.l.b16 %v1212
      %v1294 = vunpack.c.h.b16 %v1212
      %v1295 = vunpack.c.l.b16 %v1213
      %v1296 = vunpack.c.h.b16 %v1213
      %v1297 = vunpack.c.l.b16 %v1214
      %v1298 = vunpack.c.h.b16 %v1214
      %v1299 = vpack.c.b16 %v1285, %v1283
      %v1300 = vpack.c.b16 %v1286, %v1284
      %v1301 = vpack.c.b16 %v1289, %v1287
      %v1302 = vpack.c.b16 %v1290, %v1288
      %v1303 = vpack.c.b16 %v1293, %v1291
      %v1304 = vpack.c.b16 %v1294, %v1292
      %v1305 = vpack.c.b16 %v1297, %v1295
      %v1306 = vpack.c.b16 %v1298, %v1296
      %v1312 = vsel %vm578, %v1300, 0
      %v1315 = vsel %vm578, %v1302, 0
      %v1318 = vsel %vm578, %v1304, 0
      %v1321 = vsel %vm578, %v1306, 0
      %1323 = vmatprep.subr.bf16.mxu0 0
      %1324 = vmatpush1.bf16.msra.mxu0 %v1215
      %1325 = vmatprep.subr.bf16.mxu0 0
      %1326 = vmatpush1.bf16.msra.mxu0 %v1216
      %1327 = vmatprep.subr.bf16.mxu0 0
      %1328 = vmatpush1.bf16.msra.mxu0 %v1217
      %1329 = vmatprep.subr.bf16.mxu0 0
      %1330 = vmatpush1.bf16.msra.mxu0 %v1218
      %1331 = vmatprep.subr.bf16.mxu0 0
      %1332 = vmatpush1.bf16.msra.mxu0 %v1219
      %1333 = vmatprep.subr.bf16.mxu0 0
      %1334 = vmatpush1.bf16.msra.mxu0 %v1220
      %1335 = vmatprep.subr.bf16.mxu0 0
      %1336 = vmatpush1.bf16.msra.mxu0 %v1221
      %1337 = vmatprep.subr.bf16.mxu0 0
      %1338 = vmatpush1.bf16.msra.mxu0 %v1222
      %1339 = vmatprep.subr.bf16.mxu0 0
      %1340 = vmatpush1.bf16.msra.mxu0 %v1223
      %1341 = vmatprep.subr.bf16.mxu0 0
      %1342 = vmatpush1.bf16.msra.mxu0 %v1224
      %1343 = vmatprep.subr.bf16.mxu0 0
      %1344 = vmatpush1.bf16.msra.mxu0 %v1225
      %1345 = vmatprep.subr.bf16.mxu0 0
      %1346 = vmatpush1.bf16.msra.mxu0 %v1226
      %1347 = vmatprep.subr.bf16.mxu0 0
      %1348 = vmatpush1.bf16.msra.mxu0 0
      %1349 = vmatprep.subr.bf16.mxu0 0
      %1350 = vmatpush1.bf16.msra.mxu0 0
      %1351 = vmatprep.subr.bf16.mxu0 0
      %1352 = vmatpush1.bf16.msra.mxu0 0
      %1353 = vmatprep.subr.bf16.mxu0 0
      %1354 = vmatpush1.bf16.msra.mxu0 0
      %1355 = vmatprep.mubr.bf16.mxu0 %v1312
      %1356 = vmatmul.mubr.bf16.gmra.mrb[0].mxu0 %v1299
      %v1357 = vpop.f32.mrb[0].mxu0
      %v1358 = vadd.f32 %v1238, %v1357
      %v1359 = vpop.f32.mrb[0].mxu0
      %v1360 = vpop.f32.mrb[0].mxu0
      %v1361 = vadd.f32 %v1243, %v1360
      %v1362 = vpop.f32.mrb[0].mxu0
      %1363 = vmatprep.mubr.bf16.mxu0 %v1315
      %1364 = vmatmul.mubr.bf16.gmra.mrb[0].mxu0 %v1301
      %v1365 = vpop.f32.mrb[0].mxu0
      %v1366 = vadd.f32 %v1248, %v1365
      %v1367 = vpop.f32.mrb[0].mxu0
      %v1368 = vpop.f32.mrb[0].mxu0
      %v1369 = vadd.f32 %v1253, %v1368
      %v1370 = vpop.f32.mrb[0].mxu0
      %1371 = vmatprep.mubr.bf16.mxu0 %v1318
      %1372 = vmatmul.mubr.bf16.gmra.mrb[0].mxu0 %v1303
      %v1373 = vpop.f32.mrb[0].mxu0
      %v1374 = vadd.f32 %v1258, %v1373
      %v1375 = vpop.f32.mrb[0].mxu0
      %v1376 = vpop.f32.mrb[0].mxu0
      %v1377 = vadd.f32 %v1263, %v1376
      %v1378 = vpop.f32.mrb[0].mxu0
      %1379 = vmatprep.mubr.bf16.mxu0 %v1321
      %1380 = vmatmul.mubr.bf16.gmra.mrb[0].mxu0 %v1305
      %v1381 = vpop.f32.mrb[0].mxu0
      %v1382 = vadd.f32 %v1268, %v1381
      %v1383 = vpop.f32.mrb[0].mxu0
      %v1384 = vpop.f32.mrb[0].mxu0
      %v1385 = vadd.f32 %v1273, %v1384
      %v1386 = vpop.f32.mrb[0].mxu0
      %1387 = vdwg.mxu0
      %v1388 = vmax.f32 %v1358, 0.0
      %v1389 = vmax.f32 %v1361, 0.0
      %v1390 = vmax.f32 %v1366, 0.0
      %v1391 = vmax.f32 %v1369, 0.0
      %v1392 = vmax.f32 %v1374, 0.0
      %v1393 = vmax.f32 %v1377, 0.0
      %v1394 = vmax.f32 %v1382, 0.0
      %v1395 = vmax.f32 %v1385, 0.0
      %v1396 = vld [vmem:[%s7] sm:$0xf]
      %v1397 = vld [vmem:[%s7 + $0x4] sm:$0xf]
      %v1398 = vld [vmem:[%s7 + $0x8] sm:$0xf]
      %v1399 = vld [vmem:[%s7 + $0xc] sm:$0xf]
      %v1400 = vld [vmem:[%s7 + $0x10] sm:$0xf]
      %v1401 = vld [vmem:[%s7 + $0x14] sm:$0xf]
      %v1402 = vld [vmem:[%s7 + $0x18] sm:$0xf]
      %v1403 = vld [vmem:[%s7 + $0x1c] sm:$0xf]
      %v1404 = vld [vmem:[%s8] sm:$0xff]
      %v1405 = vld [vmem:[%s8 + $0x8] sm:$0xff]
      %v1406 = vld [vmem:[%s8 + $0x10] sm:$0xff]
      %v1407 = vld [vmem:[%s8 + $0x18] sm:$0xff]
      %v1408 = vld [vmem:[%s8 + $0x20] sm:$0xff]
      %v1409 = vld [vmem:[%s8 + $0x28] sm:$0xff]
      %v1410 = vld [vmem:[%s8 + $0x30] sm:$0xff]
      %v1411 = vld [vmem:[%s8 + $0x38] sm:$0xff]
      %1413 = vset.pattern.permute.xlu0 0
      %1414 = vperm.xlu0 %1413, %v1404
      %v1415 = vpop.permute.xlu0 %1414
      %1418 = vset.pattern.permute.xlu0 0
      %1419 = vperm.xlu0 %1418, %v1405
      %v1420 = vpop.permute.xlu0 %1419
      %1423 = vset.pattern.permute.xlu0 0
      %1424 = vperm.xlu0 %1423, %v1406
      %v1425 = vpop.permute.xlu0 %1424
      %1428 = vset.pattern.permute.xlu0 0
      %1429 = vperm.xlu0 %1428, %v1407
      %v1430 = vpop.permute.xlu0 %1429
      %1433 = vset.pattern.permute.xlu0 0
      %1434 = vperm.xlu0 %1433, %v1408
      %v1435 = vpop.permute.xlu0 %1434
      %1438 = vset.pattern.permute.xlu0 0
      %1439 = vperm.xlu0 %1438, %v1409
      %v1440 = vpop.permute.xlu0 %1439
      %1443 = vset.pattern.permute.xlu0 0
      %1444 = vperm.xlu0 %1443, %v1410
      %v1445 = vpop.permute.xlu0 %1444
      %1448 = vset.pattern.permute.xlu0 0
      %1449 = vperm.xlu0 %1448, %v1411
      %v1450 = vpop.permute.xlu0 %1449
      %v1460 = vunpack.c.l.b16 %v1396
      %v1461 = vunpack.c.l.b16 %v1397
      %v1462 = vunpack.c.l.b16 %v1398
      %v1463 = vunpack.c.l.b16 %v1399
      %v1464 = vunpack.c.l.b16 %v1400
      %v1465 = vunpack.c.l.b16 %v1401
      %v1466 = vunpack.c.l.b16 %v1402
      %v1467 = vunpack.c.l.b16 %v1403
      %v1468 = vpack.c.b16 %v1461, %v1460
      %v1469 = vpack.c.b16 %v1463, %v1462
      %v1470 = vpack.c.b16 %v1465, %v1464
      %v1471 = vpack.c.b16 %v1467, %v1466
      %v1473 = vsel %vm578, %v1468, 0
      %v1476 = vsel %vm578, %v1469, 0
      %v1479 = vsel %vm578, %v1470, 0
      %v1482 = vsel %vm578, %v1471, 0
      %1484 = vmatprep.subr.bf16.mxu0 0
      %1485 = vmatpush1.bf16.msra.mxu0 %v427
      %1486 = vmatprep.subr.bf16.mxu0 0
      %1487 = vmatpush1.bf16.msra.mxu0 %v429
      %1488 = vmatprep.subr.bf16.mxu0 0
      %1489 = vmatpush1.bf16.msra.mxu0 %v431
      %1490 = vmatprep.subr.bf16.mxu0 0
      %1491 = vmatpush1.bf16.msra.mxu0 %v433
      %1492 = vmatprep.subr.bf16.mxu0 0
      %1493 = vmatpush1.bf16.msra.mxu0 0
      %1494 = vmatprep.subr.bf16.mxu0 0
      %1495 = vmatpush1.bf16.msra.mxu0 0
      %1496 = vmatprep.subr.bf16.mxu0 0
      %1497 = vmatpush1.bf16.msra.mxu0 0
      %1498 = vmatprep.subr.bf16.mxu0 0
      %1499 = vmatpush1.bf16.msra.mxu0 0
      %1500 = vmatprep.subr.bf16.mxu0 0
      %1501 = vmatpush1.bf16.msra.mxu0 0
      %1502 = vmatprep.subr.bf16.mxu0 0
      %1503 = vmatpush1.bf16.msra.mxu0 0
      %1504 = vmatprep.subr.bf16.mxu0 0
      %1505 = vmatpush1.bf16.msra.mxu0 0
      %1506 = vmatprep.subr.bf16.mxu0 0
      %1507 = vmatpush1.bf16.msra.mxu0 0
      %1508 = vmatprep.subr.bf16.mxu0 0
      %1509 = vmatpush1.bf16.msra.mxu0 0
      %1510 = vmatprep.subr.bf16.mxu0 0
      %1511 = vmatpush1.bf16.msra.mxu0 0
      %1512 = vmatprep.subr.bf16.mxu0 0
      %1513 = vmatpush1.bf16.msra.mxu0 0
      %1514 = vmatprep.subr.bf16.mxu0 0
      %1515 = vmatpush1.bf16.msra.mxu0 0
      %1516 = vmatprep.mubr.bf16.mxu0 0
      %1517 = vmatmul.mubr.bf16.gmra.mrb[0].mxu0 %v1473
      %v1518 = vpop.f32.mrb[0].mxu0
      %v1519 = vadd.f32 %v1415, %v1518
      %v1520 = vpop.f32.mrb[0].mxu0
      %v1521 = vpop.f32.mrb[0].mxu0
      %v1522 = vadd.f32 %v1420, %v1521
      %v1523 = vpop.f32.mrb[0].mxu0
      %1524 = vmatprep.mubr.bf16.mxu0 0
      %1525 = vmatmul.mubr.bf16.gmra.mrb[0].mxu0 %v1476
      %v1526 = vpop.f32.mrb[0].mxu0
      %v1527 = vadd.f32 %v1425, %v1526
      %v1528 = vpop.f32.mrb[0].mxu0
      %v1529 = vpop.f32.mrb[0].mxu0
      %v1530 = vadd.f32 %v1430, %v1529
      %v1531 = vpop.f32.mrb[0].mxu0
      %1532 = vmatprep.mubr.bf16.mxu0 0
      %1533 = vmatmul.mubr.bf16.gmra.mrb[0].mxu0 %v1479
      %v1534 = vpop.f32.mrb[0].mxu0
      %v1535 = vadd.f32 %v1435, %v1534
      %v1536 = vpop.f32.mrb[0].mxu0
      %v1537 = vpop.f32.mrb[0].mxu0
      %v1538 = vadd.f32 %v1440, %v1537
      %v1539 = vpop.f32.mrb[0].mxu0
      %1540 = vmatprep.mubr.bf16.mxu0 0
      %1541 = vmatmul.mubr.bf16.gmra.mrb[0].mxu0 %v1482
      %v1542 = vpop.f32.mrb[0].mxu0
      %v1543 = vadd.f32 %v1445, %v1542
      %v1544 = vpop.f32.mrb[0].mxu0
      %v1545 = vpop.f32.mrb[0].mxu0
      %v1546 = vadd.f32 %v1450, %v1545
      %v1547 = vpop.f32.mrb[0].mxu0
      %1548 = vdwg.mxu0
      %v1549 = vadd.f32 %v1388, %v1519
      %v1550 = vadd.f32 %v1389, %v1522
      %v1551 = vadd.f32 %v1390, %v1527
      %v1552 = vadd.f32 %v1391, %v1530
      %v1553 = vadd.f32 %v1392, %v1535
      %v1554 = vadd.f32 %v1393, %v1538
      %v1555 = vadd.f32 %v1394, %v1543
      %v1556 = vadd.f32 %v1395, %v1546
      %v1557 = vmax.f32 %v1549, 0.0
      %v1558 = vmax.f32 %v1550, 0.0
      %v1559 = vmax.f32 %v1551, 0.0
      %v1560 = vmax.f32 %v1552, 0.0
      %v1561 = vmax.f32 %v1553, 0.0
      %v1562 = vmax.f32 %v1554, 0.0
      %v1563 = vmax.f32 %v1555, 0.0
      %v1564 = vmax.f32 %v1556, 0.0
      %vm1565 = vcmask 130048
      %1566 = vst.msk [vmem:[%s332] sm:$0xff] %vm1565, %v1557
      %1567 = vst.msk [vmem:[%s332 + $0x8] sm:$0xff] %vm1565, %v1558
      %1568 = vst.msk [vmem:[%s332 + $0x10] sm:$0xff] %vm1565, %v1559
      %1569 = vst.msk [vmem:[%s332 + $0x18] sm:$0xff] %vm1565, %v1560
      %1570 = vst.msk [vmem:[%s332 + $0x20] sm:$0xff] %vm1565, %v1561
      %1571 = vst.msk [vmem:[%s332 + $0x28] sm:$0xff] %vm1565, %v1562
      %1572 = vst.msk [vmem:[%s332 + $0x30] sm:$0xff] %vm1565, %v1563
      %1573 = vst.msk [vmem:[%s332 + $0x38] sm:$0xff] %vm1565, %v1564
      %p1574 = scmp.lt.s32.totalorder %s20, 1
      %s1575 = scalar_select %p1574, %s20, 1
      %s1576 = smul.addr %s1575, 8
      %s1577 = smul.addr %s1576, 8
      %s1578 = scalar_lea.vmem %s9, %s1577
      // Predicated region
      $region57: #{tpu_custom_call.1} parent=55 // pred_check
        %p1579 = pneg %p232
      $region58: #{tpu_custom_call.1} parent=55 // pred_check_branch
        %1581 = sbr.rel (%p1579) target = $region60
      $region59: #{tpu_custom_call.1} parent=55 // pred_region
        _
      $region60: #{tpu_custom_call.1} parent=55 // pred_fallthru
        _
    $region56: #{tpu_custom_call.1} parent=5 // pred_fallthru
      _
    %p1582 = scmp.le.s32.totalorder 2, %s15
    // Predicated region
    $region61: #{tpu_custom_call.1} parent=5 // pred_check
      %p1583 = pneg %p1582
    $region62: #{tpu_custom_call.1} parent=5 // pred_check_branch
      %1585 = sbr.rel (%p1583) target = $region64
    $region63: #{tpu_custom_call.1} parent=5 // pred_region
      %s1586 = ssub.s32 %s15, 2
      // Predicated region
      $region65: #{tpu_custom_call.1} parent=63 // pred_check
        %p1587 = pneg %p238
      $region66: #{tpu_custom_call.1} parent=63 // pred_check_branch
        %1589 = sbr.rel (%p1587) target = $region68
      $region67: #{tpu_custom_call.1} parent=63 // pred_region
        %p1590 = scmp.lt.s32.totalorder %s21, 1
        %s1591 = scalar_select %p1590, %s21, 1
        %s1592 = smul.addr %s1591, 8
        %s1593 = smul.addr %s1592, 8
        %s1594 = scalar_lea.vmem %s9, %s1593
      $region68: #{tpu_custom_call.1} parent=63 // pred_fallthru
        _
    $region64: #{tpu_custom_call.1} parent=5 // pred_fallthru
      _
  $region6: #{tpu_custom_call.1} parent=0 // loop_footer
    %s19 = sadd.s32 1, %s15
  $region7: #{tpu_custom_call.1} parent=0 // loop_footer_branch
    %14 = sbr.rel target = $region3
  $region8: #{tpu_custom_call.1} parent=0 // loop_exit
    _

</llo_original>
